<compile_context>
chip_gen: v7x
topology: tpu7x:2x2x1
jax: 0.10.0
libtpu: 0.0.40
codegen_flags: <defaults>
</compile_context>

<pallas_src>
import jax
import jax.numpy as jnp
from jax.experimental import pallas as pl
from jax.experimental.pallas import tpu as pltpu

# ----- small, shape-consistent config -----
VOCAB = 64          # src_vocab_size
PAD_IDX = 0
EMBED = 32          # embed_size
HEADS = 4
HEAD_DIM = EMBED // HEADS
FF = 4 * EMBED      # forward_expansion * embed_size
SEQ = 8             # = max_length
FEAT = 16           # feat_size
N = 2               # batch
EPS = 1e-5


def _full_spec(shape):
    # Block == whole array; single grid step.
    return pl.BlockSpec(shape, lambda i: (0,) * len(shape))


# --------------------------------------------------------------------------
# Single fused kernel: embedding + TransformerBlock + flatten + fc1 + BatchNorm
# --------------------------------------------------------------------------
def fused_transformer_kernel(src_col_ref, src_nk_ref, word_emb_ref, pos_ref,
                             wqkvT_ref, woT_ref, bo_ref,
                             ln1g_ref, ln1b_ref,
                             w1T_ref, b1_ref, w2T_ref, b2_ref,
                             ln2g_ref, ln2b_ref,
                             wfT_ref, bf_ref, gamma_ref, beta_ref,
                             out_ref):
    NS = N * SEQ
    inv_scale = jnp.float32(1.0 / (EMBED ** 0.5))

    # ---- embedding lookup fused as a one-hot matmul ----
    src_col = src_col_ref[...]                                       # (NS, 1) int32
    vocab_iota = jax.lax.broadcasted_iota(jnp.int32, (NS, VOCAB), 1)
    onehot = (src_col == vocab_iota).astype(jnp.float32)             # (NS, V)
    x = jnp.dot(onehot, word_emb_ref[...],
                preferred_element_type=jnp.float32)                  # (NS, E)
    pos = pos_ref[...]                                               # (S, E)
    x = x + jnp.concatenate([pos] * N, axis=0)                       # + pos_emb

    # ---- additive key-mask bias, computed once (per-batch rows) ----
    src_nk = src_nk_ref[...]                                         # (N, S) int32
    mask_bias = jnp.where(src_nk == PAD_IDX,
                          jnp.float32(-1e20), jnp.float32(0.0))      # (N, S)

    # ---- fused block-diagonal QKV projection over the whole slab ----
    qkv = jnp.dot(x, wqkvT_ref[...],
                  preferred_element_type=jnp.float32)                # (NS, 3E)
    q_all = qkv[:, 0:EMBED]
    k_all = qkv[:, EMBED:2 * EMBED]
    v_all = qkv[:, 2 * EMBED:3 * EMBED]

    dn = (((1,), (1,)), ((), ()))   # contract last dims (Q·K^T without a transpose)
    attn_rows = []
    for n in range(N):              # static, N = 2
        r0 = n * SEQ
        bias_n = mask_bias[n:n + 1, :]                               # (1, S)
        heads = []
        for h in range(HEADS):      # static, HEADS = 4
            c0 = h * HEAD_DIM
            q = q_all[r0:r0 + SEQ, c0:c0 + HEAD_DIM]
            k = k_all[r0:r0 + SEQ, c0:c0 + HEAD_DIM]
            v = v_all[r0:r0 + SEQ, c0:c0 + HEAD_DIM]
            e = jax.lax.dot_general(q, k, dn,
                                    preferred_element_type=jnp.float32)  # (S, S)
            # masked_fill(-1e20) then /sqrt(E): additive -1e20 is identical in f32
            e = (e + bias_n) * inv_scale
            e = e - jnp.max(e, axis=-1, keepdims=True)
            p = jnp.exp(e)
            p = p * pl.reciprocal(jnp.sum(p, axis=-1, keepdims=True), approx=True)
            heads.append(jnp.dot(p, v, preferred_element_type=jnp.float32))
        attn_rows.append(jnp.concatenate(heads, axis=-1))            # (S, E)
    attn = jnp.concatenate(attn_rows, axis=0)                        # (NS, E)
    attn = jnp.dot(attn, woT_ref[...],
                   preferred_element_type=jnp.float32) + bo_ref[...]

    def layer_norm(v, g, b):
        mu = jnp.mean(v, axis=-1, keepdims=True)
        var = jnp.mean((v - mu) ** 2, axis=-1, keepdims=True)
        return (v - mu) * jax.lax.rsqrt(var + EPS) * g + b

    x1 = layer_norm(attn + x, ln1g_ref[...], ln1b_ref[...])          # norm1
    h1 = jnp.maximum(
        jnp.dot(x1, w1T_ref[...], preferred_element_type=jnp.float32)
        + b1_ref[...], 0.0)                                          # ReLU
    ffn = jnp.dot(h1, w2T_ref[...],
                  preferred_element_type=jnp.float32) + b2_ref[...]
    x2 = layer_norm(ffn + x1, ln2g_ref[...], ln2b_ref[...])          # (NS, E)

    # ---- flatten (N,S,E)->(N,S*E) via static slices/concats (no lane reshape) ----
    enc_flat = jnp.concatenate(
        [jnp.concatenate(
            [x2[n * SEQ + s:n * SEQ + s + 1, :] for n in range(N)], axis=0)
         for s in range(SEQ)], axis=1)                               # (N, S*E)

    # ---- fc1 + BatchNorm1d (training-mode batch stats, biased variance) ----
    y = jnp.dot(enc_flat, wfT_ref[...],
                preferred_element_type=jnp.float32) + bf_ref[...]    # (N, FEAT)
    mu = jnp.mean(y, axis=0, keepdims=True)
    var = jnp.mean((y - mu) ** 2, axis=0, keepdims=True)
    out_ref[...] = (y - mu) * jax.lax.rsqrt(var + EPS) * gamma_ref[...] \
        + beta_ref[...]


# --------------------------------------------------------------------------
# Full model forward (one pallas_call, one grid step)
# --------------------------------------------------------------------------
@jax.jit
def transformer_forward(src, weights):
    (word_emb, pos_emb, wqkvT, woT, bo, ln1g, ln1b,
     w1T, b1, w2T, b2, ln2g, ln2b, wfT, bf, gamma, beta) = weights

    src_nk = src.astype(jnp.int32)                 # (N, S) for the pad mask
    src_col = src_nk.reshape(N * SEQ, 1)           # (N*S, 1) for the one-hot gather

    args = (src_col, src_nk, word_emb, pos_emb, wqkvT, woT, bo,
            ln1g, ln1b, w1T, b1, w2T, b2, ln2g, ln2b, wfT, bf, gamma, beta)

    return pl.pallas_call(
        fused_transformer_kernel,
        out_shape=jax.ShapeDtypeStruct((N, FEAT), jnp.float32),
        grid=(1,),
        in_specs=[_full_spec(a.shape) for a in args],
        out_specs=_full_spec((N, FEAT)),
        compiler_params=pltpu.CompilerParams(
            dimension_semantics=("arbitrary",)),
    )(*args)


def init_weights(key):
    ks = jax.random.split(key, 12)

    def rnd(k, shape, scale=0.05):
        return (scale * jax.random.normal(k, shape)).astype(jnp.float32)

    word_emb = rnd(ks[0], (VOCAB, EMBED), 1.0)
    pos_emb = rnd(ks[1], (SEQ, EMBED), 1.0)

    # per-head projections (shared across heads, like nn.Linear(head_dim, head_dim)),
    # stored pre-transposed and fused into one block-diagonal QKV weight (E, 3E).
    wqT = rnd(ks[2], (HEAD_DIM, HEAD_DIM))
    wkT = rnd(ks[3], (HEAD_DIM, HEAD_DIM))
    wvT = rnd(ks[4], (HEAD_DIM, HEAD_DIM))
    eye_h = jnp.eye(HEADS, dtype=jnp.float32)
    wqkvT = jnp.concatenate([jnp.kron(eye_h, wqT),
                             jnp.kron(eye_h, wkT),
                             jnp.kron(eye_h, wvT)], axis=1)          # (E, 3E)

    woT = rnd(ks[5], (EMBED, EMBED))
    bo = rnd(ks[6], (1, EMBED))
    ln1g = jnp.ones((1, EMBED), jnp.float32)
    ln1b = jnp.zeros((1, EMBED), jnp.float32)
    w1T = rnd(ks[7], (EMBED, FF))
    b1 = rnd(ks[8], (1, FF))
    w2T = rnd(ks[9], (FF, EMBED))
    b2 = rnd(ks[10], (1, EMBED))
    ln2g = jnp.ones((1, EMBED), jnp.float32)
    ln2b = jnp.zeros((1, EMBED), jnp.float32)

    wfT = rnd(ks[11], (SEQ * EMBED, FEAT))
    bf = jnp.zeros((1, FEAT), jnp.float32)
    gamma = jnp.ones((1, FEAT), jnp.float32)       # BatchNorm1d weight
    beta = jnp.zeros((1, FEAT), jnp.float32)       # BatchNorm1d bias

    # TODO(synk): if weights/batch grow, store weights bf16 on v6e/v7x and
    # re-introduce a batch grid axis marked "parallel".
    return (word_emb, pos_emb, wqkvT, woT, bo, ln1g, ln1b,
            w1T, b1, w2T, b2, ln2g, ln2b, wfT, bf, gamma, beta)


if __name__ == "__main__":
    key = jax.random.PRNGKey(0)
    wkey, skey = jax.random.split(key)
    weights = init_weights(wkey)
    # token ids in [0, VOCAB); id 0 == pad index, so some positions are masked.
    src = jax.random.randint(skey, (N, SEQ), 0, VOCAB, dtype=jnp.int32)

    feat = transformer_forward(src, weights)
    feat = jax.block_until_ready(feat)
    assert feat.shape == (N, FEAT)
    assert bool(jnp.all(jnp.isfinite(feat)))
    print("KERNEL_OK")
</pallas_src>

<mosaic_0001>
module attributes {stable_mosaic.version = 11 : i64} {
  func.func @fused_transformer_kernel(%arg0: i32, %arg1: memref<16x1xi32, #tpu.memory_space<vmem>>, %arg2: memref<2x8xi32, #tpu.memory_space<vmem>>, %arg3: memref<64x32xf32, #tpu.memory_space<vmem>>, %arg4: memref<8x32xf32, #tpu.memory_space<vmem>>, %arg5: memref<32x96xf32, #tpu.memory_space<vmem>>, %arg6: memref<32x32xf32, #tpu.memory_space<vmem>>, %arg7: memref<1x32xf32, #tpu.memory_space<vmem>>, %arg8: memref<1x32xf32, #tpu.memory_space<vmem>>, %arg9: memref<1x32xf32, #tpu.memory_space<vmem>>, %arg10: memref<32x128xf32, #tpu.memory_space<vmem>>, %arg11: memref<1x128xf32, #tpu.memory_space<vmem>>, %arg12: memref<128x32xf32, #tpu.memory_space<vmem>>, %arg13: memref<1x32xf32, #tpu.memory_space<vmem>>, %arg14: memref<1x32xf32, #tpu.memory_space<vmem>>, %arg15: memref<1x32xf32, #tpu.memory_space<vmem>>, %arg16: memref<256x16xf32, #tpu.memory_space<vmem>>, %arg17: memref<1x16xf32, #tpu.memory_space<vmem>>, %arg18: memref<1x16xf32, #tpu.memory_space<vmem>>, %arg19: memref<1x16xf32, #tpu.memory_space<vmem>>, %arg20: memref<2x16xf32, #tpu.memory_space<vmem>>) attributes {dimension_semantics = [#tpu.dimension_semantics<arbitrary>], iteration_bounds = array<i64: 1>, scalar_prefetch = 0 : i64, scratch_operands = 0 : i64, tpu.core_type = #tpu.core_type<tc>, window_params = [{pipeline_mode = #tpu.pipeline_mode<synchronous>, transform_indices = @transform_0, window_bounds = array<i64: 16, 1>}, {pipeline_mode = #tpu.pipeline_mode<synchronous>, transform_indices = @transform_1, window_bounds = array<i64: 2, 8>}, {pipeline_mode = #tpu.pipeline_mode<synchronous>, transform_indices = @transform_2, window_bounds = array<i64: 64, 32>}, {pipeline_mode = #tpu.pipeline_mode<synchronous>, transform_indices = @transform_3, window_bounds = array<i64: 8, 32>}, {pipeline_mode = #tpu.pipeline_mode<synchronous>, transform_indices = @transform_4, window_bounds = array<i64: 32, 96>}, {pipeline_mode = #tpu.pipeline_mode<synchronous>, transform_indices = @transform_5, window_bounds = array<i64: 32, 32>}, {pipeline_mode = #tpu.pipeline_mode<synchronous>, transform_indices = @transform_6, window_bounds = array<i64: 1, 32>}, {pipeline_mode = #tpu.pipeline_mode<synchronous>, transform_indices = @transform_7, window_bounds = array<i64: 1, 32>}, {pipeline_mode = #tpu.pipeline_mode<synchronous>, transform_indices = @transform_8, window_bounds = array<i64: 1, 32>}, {pipeline_mode = #tpu.pipeline_mode<synchronous>, transform_indices = @transform_9, window_bounds = array<i64: 32, 128>}, {pipeline_mode = #tpu.pipeline_mode<synchronous>, transform_indices = @transform_10, window_bounds = array<i64: 1, 128>}, {pipeline_mode = #tpu.pipeline_mode<synchronous>, transform_indices = @transform_11, window_bounds = array<i64: 128, 32>}, {pipeline_mode = #tpu.pipeline_mode<synchronous>, transform_indices = @transform_12, window_bounds = array<i64: 1, 32>}, {pipeline_mode = #tpu.pipeline_mode<synchronous>, transform_indices = @transform_13, window_bounds = array<i64: 1, 32>}, {pipeline_mode = #tpu.pipeline_mode<synchronous>, transform_indices = @transform_14, window_bounds = array<i64: 1, 32>}, {pipeline_mode = #tpu.pipeline_mode<synchronous>, transform_indices = @transform_15, window_bounds = array<i64: 256, 16>}, {pipeline_mode = #tpu.pipeline_mode<synchronous>, transform_indices = @transform_16, window_bounds = array<i64: 1, 16>}, {pipeline_mode = #tpu.pipeline_mode<synchronous>, transform_indices = @transform_17, window_bounds = array<i64: 1, 16>}, {pipeline_mode = #tpu.pipeline_mode<synchronous>, transform_indices = @transform_18, window_bounds = array<i64: 1, 16>}, {pipeline_mode = #tpu.pipeline_mode<synchronous>, transform_indices = @transform_19, window_bounds = array<i64: 2, 16>}]} {
    %c0 = arith.constant 0 : index
    %c0_0 = arith.constant 0 : index
    %0 = vector.load %arg1[%c0, %c0_0] : memref<16x1xi32, #tpu.memory_space<vmem>>, vector<16x1xi32>
    %1 = tpu.iota {dimensions = array<i32: 1>} : vector<16x64xi32>
    %2 = vector.broadcast %0 : vector<16x1xi32> to vector<16x64xi32>
    %3 = arith.cmpi eq, %2, %1 : vector<16x64xi32>
    %4 = arith.extui %3 : vector<16x64xi1> to vector<16x64xi32>
    %5 = arith.sitofp %4 : vector<16x64xi32> to vector<16x64xf32>
    %c0_1 = arith.constant 0 : index
    %c0_2 = arith.constant 0 : index
    %6 = vector.load %arg3[%c0_1, %c0_2] : memref<64x32xf32, #tpu.memory_space<vmem>>, vector<64x32xf32>
    %cst = arith.constant dense<0.000000e+00> : vector<16x32xf32>
    %7 = tpu.matmul %5, %6, %cst {dimension_numbers = #tpu.dot_dimension_numbers<[1], [0], [0], [1], [0, 0, 1, 1], [], []>} : vector<16x64xf32>, vector<64x32xf32>, vector<16x32xf32> -> vector<16x32xf32>
    %c0_3 = arith.constant 0 : index
    %c0_4 = arith.constant 0 : index
    %8 = vector.load %arg4[%c0_3, %c0_4] : memref<8x32xf32, #tpu.memory_space<vmem>>, vector<8x32xf32>
    %9 = tpu.concatenate %8, %8 in 0 : vector<8x32xf32>, vector<8x32xf32> -> vector<16x32xf32>
    %10 = arith.addf %7, %9 : vector<16x32xf32>
    %c0_5 = arith.constant 0 : index
    %c0_6 = arith.constant 0 : index
    %11 = vector.load %arg2[%c0_5, %c0_6] : memref<2x8xi32, #tpu.memory_space<vmem>>, vector<2x8xi32>
    %c0_i32 = arith.constant 0 : i32
    %12 = vector.broadcast %c0_i32 : i32 to vector<2x8xi32>
    %13 = arith.cmpi eq, %11, %12 : vector<2x8xi32>
    %cst_7 = arith.constant -1.000000e+20 : f32
    %cst_8 = arith.constant 0.000000e+00 : f32
    %14 = vector.broadcast %cst_7 : f32 to vector<2x8xf32>
    %15 = vector.broadcast %cst_8 : f32 to vector<2x8xf32>
    %16 = arith.select %13, %14, %15 : vector<2x8xi1>, vector<2x8xf32>
    %c0_9 = arith.constant 0 : index
    %c0_10 = arith.constant 0 : index
    %17 = vector.load %arg5[%c0_9, %c0_10] : memref<32x96xf32, #tpu.memory_space<vmem>>, vector<32x96xf32>
    %cst_11 = arith.constant dense<0.000000e+00> : vector<16x96xf32>
    %18 = tpu.matmul %10, %17, %cst_11 {dimension_numbers = #tpu.dot_dimension_numbers<[1], [0], [0], [1], [0, 0, 1, 1], [], []>} : vector<16x32xf32>, vector<32x96xf32>, vector<16x96xf32> -> vector<16x96xf32>
    %19 = vector.extract_strided_slice %18 {offsets = [0, 0], sizes = [16, 32], strides = [1, 1]} : vector<16x96xf32> to vector<16x32xf32>
    %20 = vector.extract_strided_slice %18 {offsets = [0, 32], sizes = [16, 32], strides = [1, 1]} : vector<16x96xf32> to vector<16x32xf32>
    %21 = vector.extract_strided_slice %18 {offsets = [0, 64], sizes = [16, 32], strides = [1, 1]} : vector<16x96xf32> to vector<16x32xf32>
    %22 = vector.extract_strided_slice %16 {offsets = [0, 0], sizes = [1, 8], strides = [1, 1]} : vector<2x8xf32> to vector<1x8xf32>
    %23 = vector.extract_strided_slice %19 {offsets = [0, 0], sizes = [8, 8], strides = [1, 1]} : vector<16x32xf32> to vector<8x8xf32>
    %24 = vector.extract_strided_slice %20 {offsets = [0, 0], sizes = [8, 8], strides = [1, 1]} : vector<16x32xf32> to vector<8x8xf32>
    %25 = vector.extract_strided_slice %21 {offsets = [0, 0], sizes = [8, 8], strides = [1, 1]} : vector<16x32xf32> to vector<8x8xf32>
    %cst_12 = arith.constant dense<0.000000e+00> : vector<8x8xf32>
    %26 = tpu.matmul %23, %24, %cst_12 {dimension_numbers = #tpu.dot_dimension_numbers<[1], [1], [0], [0], [0, 0, 1, 0], [], []>} : vector<8x8xf32>, vector<8x8xf32>, vector<8x8xf32> -> vector<8x8xf32>
    %27 = vector.broadcast %22 : vector<1x8xf32> to vector<8x8xf32>
    %28 = arith.addf %26, %27 : vector<8x8xf32>
    %cst_13 = arith.constant 0.176776692 : f32
    %29 = vector.broadcast %cst_13 : f32 to vector<8x8xf32>
    %30 = arith.mulf %28, %29 : vector<8x8xf32>
    %cst_14 = arith.constant dense<0xFF800000> : vector<8xf32>
    %31 = vector.multi_reduction <maximumf>, %30, %cst_14 [1] : vector<8x8xf32> to vector<8xf32>
    %32 = vector.shape_cast %31 : vector<8xf32> to vector<8x1xf32>
    %33 = vector.broadcast %32 : vector<8x1xf32> to vector<8x8xf32>
    %34 = arith.subf %30, %33 : vector<8x8xf32>
    %35 = math.exp %34 : vector<8x8xf32>
    %cst_15 = arith.constant dense<0.000000e+00> : vector<8xf32>
    %36 = vector.multi_reduction <add>, %35, %cst_15 [1] : vector<8x8xf32> to vector<8xf32>
    %37 = vector.shape_cast %36 : vector<8xf32> to vector<8x1xf32>
    %38 = tpu.reciprocal %37 {approx = true} : vector<8x1xf32> -> vector<8x1xf32>
    %39 = vector.broadcast %38 : vector<8x1xf32> to vector<8x8xf32>
    %40 = arith.mulf %35, %39 : vector<8x8xf32>
    %cst_16 = arith.constant dense<0.000000e+00> : vector<8x8xf32>
    %41 = tpu.matmul %40, %25, %cst_16 {dimension_numbers = #tpu.dot_dimension_numbers<[1], [0], [0], [1], [0, 0, 1, 1], [], []>} : vector<8x8xf32>, vector<8x8xf32>, vector<8x8xf32> -> vector<8x8xf32>
    %42 = vector.extract_strided_slice %19 {offsets = [0, 8], sizes = [8, 8], strides = [1, 1]} : vector<16x32xf32> to vector<8x8xf32>
    %43 = vector.extract_strided_slice %20 {offsets = [0, 8], sizes = [8, 8], strides = [1, 1]} : vector<16x32xf32> to vector<8x8xf32>
    %44 = vector.extract_strided_slice %21 {offsets = [0, 8], sizes = [8, 8], strides = [1, 1]} : vector<16x32xf32> to vector<8x8xf32>
    %cst_17 = arith.constant dense<0.000000e+00> : vector<8x8xf32>
    %45 = tpu.matmul %42, %43, %cst_17 {dimension_numbers = #tpu.dot_dimension_numbers<[1], [1], [0], [0], [0, 0, 1, 0], [], []>} : vector<8x8xf32>, vector<8x8xf32>, vector<8x8xf32> -> vector<8x8xf32>
    %46 = vector.broadcast %22 : vector<1x8xf32> to vector<8x8xf32>
    %47 = arith.addf %45, %46 : vector<8x8xf32>
    %cst_18 = arith.constant 0.176776692 : f32
    %48 = vector.broadcast %cst_18 : f32 to vector<8x8xf32>
    %49 = arith.mulf %47, %48 : vector<8x8xf32>
    %cst_19 = arith.constant dense<0xFF800000> : vector<8xf32>
    %50 = vector.multi_reduction <maximumf>, %49, %cst_19 [1] : vector<8x8xf32> to vector<8xf32>
    %51 = vector.shape_cast %50 : vector<8xf32> to vector<8x1xf32>
    %52 = vector.broadcast %51 : vector<8x1xf32> to vector<8x8xf32>
    %53 = arith.subf %49, %52 : vector<8x8xf32>
    %54 = math.exp %53 : vector<8x8xf32>
    %cst_20 = arith.constant dense<0.000000e+00> : vector<8xf32>
    %55 = vector.multi_reduction <add>, %54, %cst_20 [1] : vector<8x8xf32> to vector<8xf32>
    %56 = vector.shape_cast %55 : vector<8xf32> to vector<8x1xf32>
    %57 = tpu.reciprocal %56 {approx = true} : vector<8x1xf32> -> vector<8x1xf32>
    %58 = vector.broadcast %57 : vector<8x1xf32> to vector<8x8xf32>
    %59 = arith.mulf %54, %58 : vector<8x8xf32>
    %cst_21 = arith.constant dense<0.000000e+00> : vector<8x8xf32>
    %60 = tpu.matmul %59, %44, %cst_21 {dimension_numbers = #tpu.dot_dimension_numbers<[1], [0], [0], [1], [0, 0, 1, 1], [], []>} : vector<8x8xf32>, vector<8x8xf32>, vector<8x8xf32> -> vector<8x8xf32>
    %61 = vector.extract_strided_slice %19 {offsets = [0, 16], sizes = [8, 8], strides = [1, 1]} : vector<16x32xf32> to vector<8x8xf32>
    %62 = vector.extract_strided_slice %20 {offsets = [0, 16], sizes = [8, 8], strides = [1, 1]} : vector<16x32xf32> to vector<8x8xf32>
    %63 = vector.extract_strided_slice %21 {offsets = [0, 16], sizes = [8, 8], strides = [1, 1]} : vector<16x32xf32> to vector<8x8xf32>
    %cst_22 = arith.constant dense<0.000000e+00> : vector<8x8xf32>
    %64 = tpu.matmul %61, %62, %cst_22 {dimension_numbers = #tpu.dot_dimension_numbers<[1], [1], [0], [0], [0, 0, 1, 0], [], []>} : vector<8x8xf32>, vector<8x8xf32>, vector<8x8xf32> -> vector<8x8xf32>
    %65 = vector.broadcast %22 : vector<1x8xf32> to vector<8x8xf32>
    %66 = arith.addf %64, %65 : vector<8x8xf32>
    %cst_23 = arith.constant 0.176776692 : f32
    %67 = vector.broadcast %cst_23 : f32 to vector<8x8xf32>
    %68 = arith.mulf %66, %67 : vector<8x8xf32>
    %cst_24 = arith.constant dense<0xFF800000> : vector<8xf32>
    %69 = vector.multi_reduction <maximumf>, %68, %cst_24 [1] : vector<8x8xf32> to vector<8xf32>
    %70 = vector.shape_cast %69 : vector<8xf32> to vector<8x1xf32>
    %71 = vector.broadcast %70 : vector<8x1xf32> to vector<8x8xf32>
    %72 = arith.subf %68, %71 : vector<8x8xf32>
    %73 = math.exp %72 : vector<8x8xf32>
    %cst_25 = arith.constant dense<0.000000e+00> : vector<8xf32>
    %74 = vector.multi_reduction <add>, %73, %cst_25 [1] : vector<8x8xf32> to vector<8xf32>
    %75 = vector.shape_cast %74 : vector<8xf32> to vector<8x1xf32>
    %76 = tpu.reciprocal %75 {approx = true} : vector<8x1xf32> -> vector<8x1xf32>
    %77 = vector.broadcast %76 : vector<8x1xf32> to vector<8x8xf32>
    %78 = arith.mulf %73, %77 : vector<8x8xf32>
    %cst_26 = arith.constant dense<0.000000e+00> : vector<8x8xf32>
    %79 = tpu.matmul %78, %63, %cst_26 {dimension_numbers = #tpu.dot_dimension_numbers<[1], [0], [0], [1], [0, 0, 1, 1], [], []>} : vector<8x8xf32>, vector<8x8xf32>, vector<8x8xf32> -> vector<8x8xf32>
    %80 = vector.extract_strided_slice %19 {offsets = [0, 24], sizes = [8, 8], strides = [1, 1]} : vector<16x32xf32> to vector<8x8xf32>
    %81 = vector.extract_strided_slice %20 {offsets = [0, 24], sizes = [8, 8], strides = [1, 1]} : vector<16x32xf32> to vector<8x8xf32>
    %82 = vector.extract_strided_slice %21 {offsets = [0, 24], sizes = [8, 8], strides = [1, 1]} : vector<16x32xf32> to vector<8x8xf32>
    %cst_27 = arith.constant dense<0.000000e+00> : vector<8x8xf32>
    %83 = tpu.matmul %80, %81, %cst_27 {dimension_numbers = #tpu.dot_dimension_numbers<[1], [1], [0], [0], [0, 0, 1, 0], [], []>} : vector<8x8xf32>, vector<8x8xf32>, vector<8x8xf32> -> vector<8x8xf32>
    %84 = vector.broadcast %22 : vector<1x8xf32> to vector<8x8xf32>
    %85 = arith.addf %83, %84 : vector<8x8xf32>
    %cst_28 = arith.constant 0.176776692 : f32
    %86 = vector.broadcast %cst_28 : f32 to vector<8x8xf32>
    %87 = arith.mulf %85, %86 : vector<8x8xf32>
    %cst_29 = arith.constant dense<0xFF800000> : vector<8xf32>
    %88 = vector.multi_reduction <maximumf>, %87, %cst_29 [1] : vector<8x8xf32> to vector<8xf32>
    %89 = vector.shape_cast %88 : vector<8xf32> to vector<8x1xf32>
    %90 = vector.broadcast %89 : vector<8x1xf32> to vector<8x8xf32>
    %91 = arith.subf %87, %90 : vector<8x8xf32>
    %92 = math.exp %91 : vector<8x8xf32>
    %cst_30 = arith.constant dense<0.000000e+00> : vector<8xf32>
    %93 = vector.multi_reduction <add>, %92, %cst_30 [1] : vector<8x8xf32> to vector<8xf32>
    %94 = vector.shape_cast %93 : vector<8xf32> to vector<8x1xf32>
    %95 = tpu.reciprocal %94 {approx = true} : vector<8x1xf32> -> vector<8x1xf32>
    %96 = vector.broadcast %95 : vector<8x1xf32> to vector<8x8xf32>
    %97 = arith.mulf %92, %96 : vector<8x8xf32>
    %cst_31 = arith.constant dense<0.000000e+00> : vector<8x8xf32>
    %98 = tpu.matmul %97, %82, %cst_31 {dimension_numbers = #tpu.dot_dimension_numbers<[1], [0], [0], [1], [0, 0, 1, 1], [], []>} : vector<8x8xf32>, vector<8x8xf32>, vector<8x8xf32> -> vector<8x8xf32>
    %99 = tpu.concatenate %41, %60, %79, %98 in 1 : vector<8x8xf32>, vector<8x8xf32>, vector<8x8xf32>, vector<8x8xf32> -> vector<8x32xf32>
    %100 = vector.extract_strided_slice %16 {offsets = [1, 0], sizes = [1, 8], strides = [1, 1]} : vector<2x8xf32> to vector<1x8xf32>
    %101 = vector.extract_strided_slice %19 {offsets = [8, 0], sizes = [8, 8], strides = [1, 1]} : vector<16x32xf32> to vector<8x8xf32>
    %102 = vector.extract_strided_slice %20 {offsets = [8, 0], sizes = [8, 8], strides = [1, 1]} : vector<16x32xf32> to vector<8x8xf32>
    %103 = vector.extract_strided_slice %21 {offsets = [8, 0], sizes = [8, 8], strides = [1, 1]} : vector<16x32xf32> to vector<8x8xf32>
    %cst_32 = arith.constant dense<0.000000e+00> : vector<8x8xf32>
    %104 = tpu.matmul %101, %102, %cst_32 {dimension_numbers = #tpu.dot_dimension_numbers<[1], [1], [0], [0], [0, 0, 1, 0], [], []>} : vector<8x8xf32>, vector<8x8xf32>, vector<8x8xf32> -> vector<8x8xf32>
    %105 = vector.broadcast %100 : vector<1x8xf32> to vector<8x8xf32>
    %106 = arith.addf %104, %105 : vector<8x8xf32>
    %cst_33 = arith.constant 0.176776692 : f32
    %107 = vector.broadcast %cst_33 : f32 to vector<8x8xf32>
    %108 = arith.mulf %106, %107 : vector<8x8xf32>
    %cst_34 = arith.constant dense<0xFF800000> : vector<8xf32>
    %109 = vector.multi_reduction <maximumf>, %108, %cst_34 [1] : vector<8x8xf32> to vector<8xf32>
    %110 = vector.shape_cast %109 : vector<8xf32> to vector<8x1xf32>
    %111 = vector.broadcast %110 : vector<8x1xf32> to vector<8x8xf32>
    %112 = arith.subf %108, %111 : vector<8x8xf32>
    %113 = math.exp %112 : vector<8x8xf32>
    %cst_35 = arith.constant dense<0.000000e+00> : vector<8xf32>
    %114 = vector.multi_reduction <add>, %113, %cst_35 [1] : vector<8x8xf32> to vector<8xf32>
    %115 = vector.shape_cast %114 : vector<8xf32> to vector<8x1xf32>
    %116 = tpu.reciprocal %115 {approx = true} : vector<8x1xf32> -> vector<8x1xf32>
    %117 = vector.broadcast %116 : vector<8x1xf32> to vector<8x8xf32>
    %118 = arith.mulf %113, %117 : vector<8x8xf32>
    %cst_36 = arith.constant dense<0.000000e+00> : vector<8x8xf32>
    %119 = tpu.matmul %118, %103, %cst_36 {dimension_numbers = #tpu.dot_dimension_numbers<[1], [0], [0], [1], [0, 0, 1, 1], [], []>} : vector<8x8xf32>, vector<8x8xf32>, vector<8x8xf32> -> vector<8x8xf32>
    %120 = vector.extract_strided_slice %19 {offsets = [8, 8], sizes = [8, 8], strides = [1, 1]} : vector<16x32xf32> to vector<8x8xf32>
    %121 = vector.extract_strided_slice %20 {offsets = [8, 8], sizes = [8, 8], strides = [1, 1]} : vector<16x32xf32> to vector<8x8xf32>
    %122 = vector.extract_strided_slice %21 {offsets = [8, 8], sizes = [8, 8], strides = [1, 1]} : vector<16x32xf32> to vector<8x8xf32>
    %cst_37 = arith.constant dense<0.000000e+00> : vector<8x8xf32>
    %123 = tpu.matmul %120, %121, %cst_37 {dimension_numbers = #tpu.dot_dimension_numbers<[1], [1], [0], [0], [0, 0, 1, 0], [], []>} : vector<8x8xf32>, vector<8x8xf32>, vector<8x8xf32> -> vector<8x8xf32>
    %124 = vector.broadcast %100 : vector<1x8xf32> to vector<8x8xf32>
    %125 = arith.addf %123, %124 : vector<8x8xf32>
    %cst_38 = arith.constant 0.176776692 : f32
    %126 = vector.broadcast %cst_38 : f32 to vector<8x8xf32>
    %127 = arith.mulf %125, %126 : vector<8x8xf32>
    %cst_39 = arith.constant dense<0xFF800000> : vector<8xf32>
    %128 = vector.multi_reduction <maximumf>, %127, %cst_39 [1] : vector<8x8xf32> to vector<8xf32>
    %129 = vector.shape_cast %128 : vector<8xf32> to vector<8x1xf32>
    %130 = vector.broadcast %129 : vector<8x1xf32> to vector<8x8xf32>
    %131 = arith.subf %127, %130 : vector<8x8xf32>
    %132 = math.exp %131 : vector<8x8xf32>
    %cst_40 = arith.constant dense<0.000000e+00> : vector<8xf32>
    %133 = vector.multi_reduction <add>, %132, %cst_40 [1] : vector<8x8xf32> to vector<8xf32>
    %134 = vector.shape_cast %133 : vector<8xf32> to vector<8x1xf32>
    %135 = tpu.reciprocal %134 {approx = true} : vector<8x1xf32> -> vector<8x1xf32>
    %136 = vector.broadcast %135 : vector<8x1xf32> to vector<8x8xf32>
    %137 = arith.mulf %132, %136 : vector<8x8xf32>
    %cst_41 = arith.constant dense<0.000000e+00> : vector<8x8xf32>
    %138 = tpu.matmul %137, %122, %cst_41 {dimension_numbers = #tpu.dot_dimension_numbers<[1], [0], [0], [1], [0, 0, 1, 1], [], []>} : vector<8x8xf32>, vector<8x8xf32>, vector<8x8xf32> -> vector<8x8xf32>
    %139 = vector.extract_strided_slice %19 {offsets = [8, 16], sizes = [8, 8], strides = [1, 1]} : vector<16x32xf32> to vector<8x8xf32>
    %140 = vector.extract_strided_slice %20 {offsets = [8, 16], sizes = [8, 8], strides = [1, 1]} : vector<16x32xf32> to vector<8x8xf32>
    %141 = vector.extract_strided_slice %21 {offsets = [8, 16], sizes = [8, 8], strides = [1, 1]} : vector<16x32xf32> to vector<8x8xf32>
    %cst_42 = arith.constant dense<0.000000e+00> : vector<8x8xf32>
    %142 = tpu.matmul %139, %140, %cst_42 {dimension_numbers = #tpu.dot_dimension_numbers<[1], [1], [0], [0], [0, 0, 1, 0], [], []>} : vector<8x8xf32>, vector<8x8xf32>, vector<8x8xf32> -> vector<8x8xf32>
    %143 = vector.broadcast %100 : vector<1x8xf32> to vector<8x8xf32>
    %144 = arith.addf %142, %143 : vector<8x8xf32>
    %cst_43 = arith.constant 0.176776692 : f32
    %145 = vector.broadcast %cst_43 : f32 to vector<8x8xf32>
    %146 = arith.mulf %144, %145 : vector<8x8xf32>
    %cst_44 = arith.constant dense<0xFF800000> : vector<8xf32>
    %147 = vector.multi_reduction <maximumf>, %146, %cst_44 [1] : vector<8x8xf32> to vector<8xf32>
    %148 = vector.shape_cast %147 : vector<8xf32> to vector<8x1xf32>
    %149 = vector.broadcast %148 : vector<8x1xf32> to vector<8x8xf32>
    %150 = arith.subf %146, %149 : vector<8x8xf32>
    %151 = math.exp %150 : vector<8x8xf32>
    %cst_45 = arith.constant dense<0.000000e+00> : vector<8xf32>
    %152 = vector.multi_reduction <add>, %151, %cst_45 [1] : vector<8x8xf32> to vector<8xf32>
    %153 = vector.shape_cast %152 : vector<8xf32> to vector<8x1xf32>
    %154 = tpu.reciprocal %153 {approx = true} : vector<8x1xf32> -> vector<8x1xf32>
    %155 = vector.broadcast %154 : vector<8x1xf32> to vector<8x8xf32>
    %156 = arith.mulf %151, %155 : vector<8x8xf32>
    %cst_46 = arith.constant dense<0.000000e+00> : vector<8x8xf32>
    %157 = tpu.matmul %156, %141, %cst_46 {dimension_numbers = #tpu.dot_dimension_numbers<[1], [0], [0], [1], [0, 0, 1, 1], [], []>} : vector<8x8xf32>, vector<8x8xf32>, vector<8x8xf32> -> vector<8x8xf32>
    %158 = vector.extract_strided_slice %19 {offsets = [8, 24], sizes = [8, 8], strides = [1, 1]} : vector<16x32xf32> to vector<8x8xf32>
    %159 = vector.extract_strided_slice %20 {offsets = [8, 24], sizes = [8, 8], strides = [1, 1]} : vector<16x32xf32> to vector<8x8xf32>
    %160 = vector.extract_strided_slice %21 {offsets = [8, 24], sizes = [8, 8], strides = [1, 1]} : vector<16x32xf32> to vector<8x8xf32>
    %cst_47 = arith.constant dense<0.000000e+00> : vector<8x8xf32>
    %161 = tpu.matmul %158, %159, %cst_47 {dimension_numbers = #tpu.dot_dimension_numbers<[1], [1], [0], [0], [0, 0, 1, 0], [], []>} : vector<8x8xf32>, vector<8x8xf32>, vector<8x8xf32> -> vector<8x8xf32>
    %162 = vector.broadcast %100 : vector<1x8xf32> to vector<8x8xf32>
    %163 = arith.addf %161, %162 : vector<8x8xf32>
    %cst_48 = arith.constant 0.176776692 : f32
    %164 = vector.broadcast %cst_48 : f32 to vector<8x8xf32>
    %165 = arith.mulf %163, %164 : vector<8x8xf32>
    %cst_49 = arith.constant dense<0xFF800000> : vector<8xf32>
    %166 = vector.multi_reduction <maximumf>, %165, %cst_49 [1] : vector<8x8xf32> to vector<8xf32>
    %167 = vector.shape_cast %166 : vector<8xf32> to vector<8x1xf32>
    %168 = vector.broadcast %167 : vector<8x1xf32> to vector<8x8xf32>
    %169 = arith.subf %165, %168 : vector<8x8xf32>
    %170 = math.exp %169 : vector<8x8xf32>
    %cst_50 = arith.constant dense<0.000000e+00> : vector<8xf32>
    %171 = vector.multi_reduction <add>, %170, %cst_50 [1] : vector<8x8xf32> to vector<8xf32>
    %172 = vector.shape_cast %171 : vector<8xf32> to vector<8x1xf32>
    %173 = tpu.reciprocal %172 {approx = true} : vector<8x1xf32> -> vector<8x1xf32>
    %174 = vector.broadcast %173 : vector<8x1xf32> to vector<8x8xf32>
    %175 = arith.mulf %170, %174 : vector<8x8xf32>
    %cst_51 = arith.constant dense<0.000000e+00> : vector<8x8xf32>
    %176 = tpu.matmul %175, %160, %cst_51 {dimension_numbers = #tpu.dot_dimension_numbers<[1], [0], [0], [1], [0, 0, 1, 1], [], []>} : vector<8x8xf32>, vector<8x8xf32>, vector<8x8xf32> -> vector<8x8xf32>
    %177 = tpu.concatenate %119, %138, %157, %176 in 1 : vector<8x8xf32>, vector<8x8xf32>, vector<8x8xf32>, vector<8x8xf32> -> vector<8x32xf32>
    %178 = tpu.concatenate %99, %177 in 0 : vector<8x32xf32>, vector<8x32xf32> -> vector<16x32xf32>
    %c0_52 = arith.constant 0 : index
    %c0_53 = arith.constant 0 : index
    %179 = vector.load %arg6[%c0_52, %c0_53] : memref<32x32xf32, #tpu.memory_space<vmem>>, vector<32x32xf32>
    %cst_54 = arith.constant dense<0.000000e+00> : vector<16x32xf32>
    %180 = tpu.matmul %178, %179, %cst_54 {dimension_numbers = #tpu.dot_dimension_numbers<[1], [0], [0], [1], [0, 0, 1, 1], [], []>} : vector<16x32xf32>, vector<32x32xf32>, vector<16x32xf32> -> vector<16x32xf32>
    %c0_55 = arith.constant 0 : index
    %c0_56 = arith.constant 0 : index
    %181 = vector.load %arg7[%c0_55, %c0_56] : memref<1x32xf32, #tpu.memory_space<vmem>>, vector<1x32xf32>
    %182 = vector.broadcast %181 : vector<1x32xf32> to vector<16x32xf32>
    %183 = arith.addf %180, %182 : vector<16x32xf32>
    %184 = arith.addf %183, %10 : vector<16x32xf32>
    %c0_57 = arith.constant 0 : index
    %c0_58 = arith.constant 0 : index
    %185 = vector.load %arg8[%c0_57, %c0_58] : memref<1x32xf32, #tpu.memory_space<vmem>>, vector<1x32xf32>
    %c0_59 = arith.constant 0 : index
    %c0_60 = arith.constant 0 : index
    %186 = vector.load %arg9[%c0_59, %c0_60] : memref<1x32xf32, #tpu.memory_space<vmem>>, vector<1x32xf32>
    %cst_61 = arith.constant dense<0.000000e+00> : vector<16xf32>
    %187 = vector.multi_reduction <add>, %184, %cst_61 [1] : vector<16x32xf32> to vector<16xf32>
    %188 = vector.shape_cast %187 : vector<16xf32> to vector<16x1xf32>
    %cst_62 = arith.constant 3.200000e+01 : f32
    %189 = vector.broadcast %cst_62 : f32 to vector<16x1xf32>
    %190 = arith.divf %188, %189 : vector<16x1xf32>
    %191 = vector.broadcast %190 : vector<16x1xf32> to vector<16x32xf32>
    %192 = arith.subf %184, %191 : vector<16x32xf32>
    %193 = arith.mulf %192, %192 : vector<16x32xf32>
    %cst_63 = arith.constant dense<0.000000e+00> : vector<16xf32>
    %194 = vector.multi_reduction <add>, %193, %cst_63 [1] : vector<16x32xf32> to vector<16xf32>
    %195 = vector.shape_cast %194 : vector<16xf32> to vector<16x1xf32>
    %cst_64 = arith.constant 3.200000e+01 : f32
    %196 = vector.broadcast %cst_64 : f32 to vector<16x1xf32>
    %197 = arith.divf %195, %196 : vector<16x1xf32>
    %198 = vector.broadcast %190 : vector<16x1xf32> to vector<16x32xf32>
    %199 = arith.subf %184, %198 : vector<16x32xf32>
    %cst_65 = arith.constant 9.99999974E-6 : f32
    %200 = vector.broadcast %cst_65 : f32 to vector<16x1xf32>
    %201 = arith.addf %197, %200 : vector<16x1xf32>
    %202 = math.rsqrt %201 : vector<16x1xf32>
    %203 = vector.broadcast %202 : vector<16x1xf32> to vector<16x32xf32>
    %204 = arith.mulf %199, %203 : vector<16x32xf32>
    %205 = vector.broadcast %185 : vector<1x32xf32> to vector<16x32xf32>
    %206 = arith.mulf %204, %205 : vector<16x32xf32>
    %207 = vector.broadcast %186 : vector<1x32xf32> to vector<16x32xf32>
    %208 = arith.addf %206, %207 : vector<16x32xf32>
    %c0_66 = arith.constant 0 : index
    %c0_67 = arith.constant 0 : index
    %209 = vector.load %arg10[%c0_66, %c0_67] : memref<32x128xf32, #tpu.memory_space<vmem>>, vector<32x128xf32>
    %cst_68 = arith.constant dense<0.000000e+00> : vector<16x128xf32>
    %210 = tpu.matmul %208, %209, %cst_68 {dimension_numbers = #tpu.dot_dimension_numbers<[1], [0], [0], [1], [0, 0, 1, 1], [], []>} : vector<16x32xf32>, vector<32x128xf32>, vector<16x128xf32> -> vector<16x128xf32>
    %c0_69 = arith.constant 0 : index
    %c0_70 = arith.constant 0 : index
    %211 = vector.load %arg11[%c0_69, %c0_70] : memref<1x128xf32, #tpu.memory_space<vmem>>, vector<1x128xf32>
    %212 = vector.broadcast %211 : vector<1x128xf32> to vector<16x128xf32>
    %213 = arith.addf %210, %212 : vector<16x128xf32>
    %cst_71 = arith.constant 0.000000e+00 : f32
    %214 = vector.broadcast %cst_71 : f32 to vector<16x128xf32>
    %215 = arith.maximumf %213, %214 : vector<16x128xf32>
    %c0_72 = arith.constant 0 : index
    %c0_73 = arith.constant 0 : index
    %216 = vector.load %arg12[%c0_72, %c0_73] : memref<128x32xf32, #tpu.memory_space<vmem>>, vector<128x32xf32>
    %cst_74 = arith.constant dense<0.000000e+00> : vector<16x32xf32>
    %217 = tpu.matmul %215, %216, %cst_74 {dimension_numbers = #tpu.dot_dimension_numbers<[1], [0], [0], [1], [0, 0, 1, 1], [], []>} : vector<16x128xf32>, vector<128x32xf32>, vector<16x32xf32> -> vector<16x32xf32>
    %c0_75 = arith.constant 0 : index
    %c0_76 = arith.constant 0 : index
    %218 = vector.load %arg13[%c0_75, %c0_76] : memref<1x32xf32, #tpu.memory_space<vmem>>, vector<1x32xf32>
    %219 = vector.broadcast %218 : vector<1x32xf32> to vector<16x32xf32>
    %220 = arith.addf %217, %219 : vector<16x32xf32>
    %221 = arith.addf %220, %208 : vector<16x32xf32>
    %c0_77 = arith.constant 0 : index
    %c0_78 = arith.constant 0 : index
    %222 = vector.load %arg14[%c0_77, %c0_78] : memref<1x32xf32, #tpu.memory_space<vmem>>, vector<1x32xf32>
    %c0_79 = arith.constant 0 : index
    %c0_80 = arith.constant 0 : index
    %223 = vector.load %arg15[%c0_79, %c0_80] : memref<1x32xf32, #tpu.memory_space<vmem>>, vector<1x32xf32>
    %cst_81 = arith.constant dense<0.000000e+00> : vector<16xf32>
    %224 = vector.multi_reduction <add>, %221, %cst_81 [1] : vector<16x32xf32> to vector<16xf32>
    %225 = vector.shape_cast %224 : vector<16xf32> to vector<16x1xf32>
    %cst_82 = arith.constant 3.200000e+01 : f32
    %226 = vector.broadcast %cst_82 : f32 to vector<16x1xf32>
    %227 = arith.divf %225, %226 : vector<16x1xf32>
    %228 = vector.broadcast %227 : vector<16x1xf32> to vector<16x32xf32>
    %229 = arith.subf %221, %228 : vector<16x32xf32>
    %230 = arith.mulf %229, %229 : vector<16x32xf32>
    %cst_83 = arith.constant dense<0.000000e+00> : vector<16xf32>
    %231 = vector.multi_reduction <add>, %230, %cst_83 [1] : vector<16x32xf32> to vector<16xf32>
    %232 = vector.shape_cast %231 : vector<16xf32> to vector<16x1xf32>
    %cst_84 = arith.constant 3.200000e+01 : f32
    %233 = vector.broadcast %cst_84 : f32 to vector<16x1xf32>
    %234 = arith.divf %232, %233 : vector<16x1xf32>
    %235 = vector.broadcast %227 : vector<16x1xf32> to vector<16x32xf32>
    %236 = arith.subf %221, %235 : vector<16x32xf32>
    %cst_85 = arith.constant 9.99999974E-6 : f32
    %237 = vector.broadcast %cst_85 : f32 to vector<16x1xf32>
    %238 = arith.addf %234, %237 : vector<16x1xf32>
    %239 = math.rsqrt %238 : vector<16x1xf32>
    %240 = vector.broadcast %239 : vector<16x1xf32> to vector<16x32xf32>
    %241 = arith.mulf %236, %240 : vector<16x32xf32>
    %242 = vector.broadcast %222 : vector<1x32xf32> to vector<16x32xf32>
    %243 = arith.mulf %241, %242 : vector<16x32xf32>
    %244 = vector.broadcast %223 : vector<1x32xf32> to vector<16x32xf32>
    %245 = arith.addf %243, %244 : vector<16x32xf32>
    %246 = vector.extract_strided_slice %245 {offsets = [0, 0], sizes = [1, 32], strides = [1, 1]} : vector<16x32xf32> to vector<1x32xf32>
    %247 = vector.extract_strided_slice %245 {offsets = [8, 0], sizes = [1, 32], strides = [1, 1]} : vector<16x32xf32> to vector<1x32xf32>
    %248 = tpu.concatenate %246, %247 in 0 : vector<1x32xf32>, vector<1x32xf32> -> vector<2x32xf32>
    %249 = vector.extract_strided_slice %245 {offsets = [1, 0], sizes = [1, 32], strides = [1, 1]} : vector<16x32xf32> to vector<1x32xf32>
    %250 = vector.extract_strided_slice %245 {offsets = [9, 0], sizes = [1, 32], strides = [1, 1]} : vector<16x32xf32> to vector<1x32xf32>
    %251 = tpu.concatenate %249, %250 in 0 : vector<1x32xf32>, vector<1x32xf32> -> vector<2x32xf32>
    %252 = vector.extract_strided_slice %245 {offsets = [2, 0], sizes = [1, 32], strides = [1, 1]} : vector<16x32xf32> to vector<1x32xf32>
    %253 = vector.extract_strided_slice %245 {offsets = [10, 0], sizes = [1, 32], strides = [1, 1]} : vector<16x32xf32> to vector<1x32xf32>
    %254 = tpu.concatenate %252, %253 in 0 : vector<1x32xf32>, vector<1x32xf32> -> vector<2x32xf32>
    %255 = vector.extract_strided_slice %245 {offsets = [3, 0], sizes = [1, 32], strides = [1, 1]} : vector<16x32xf32> to vector<1x32xf32>
    %256 = vector.extract_strided_slice %245 {offsets = [11, 0], sizes = [1, 32], strides = [1, 1]} : vector<16x32xf32> to vector<1x32xf32>
    %257 = tpu.concatenate %255, %256 in 0 : vector<1x32xf32>, vector<1x32xf32> -> vector<2x32xf32>
    %258 = vector.extract_strided_slice %245 {offsets = [4, 0], sizes = [1, 32], strides = [1, 1]} : vector<16x32xf32> to vector<1x32xf32>
    %259 = vector.extract_strided_slice %245 {offsets = [12, 0], sizes = [1, 32], strides = [1, 1]} : vector<16x32xf32> to vector<1x32xf32>
    %260 = tpu.concatenate %258, %259 in 0 : vector<1x32xf32>, vector<1x32xf32> -> vector<2x32xf32>
    %261 = vector.extract_strided_slice %245 {offsets = [5, 0], sizes = [1, 32], strides = [1, 1]} : vector<16x32xf32> to vector<1x32xf32>
    %262 = vector.extract_strided_slice %245 {offsets = [13, 0], sizes = [1, 32], strides = [1, 1]} : vector<16x32xf32> to vector<1x32xf32>
    %263 = tpu.concatenate %261, %262 in 0 : vector<1x32xf32>, vector<1x32xf32> -> vector<2x32xf32>
    %264 = vector.extract_strided_slice %245 {offsets = [6, 0], sizes = [1, 32], strides = [1, 1]} : vector<16x32xf32> to vector<1x32xf32>
    %265 = vector.extract_strided_slice %245 {offsets = [14, 0], sizes = [1, 32], strides = [1, 1]} : vector<16x32xf32> to vector<1x32xf32>
    %266 = tpu.concatenate %264, %265 in 0 : vector<1x32xf32>, vector<1x32xf32> -> vector<2x32xf32>
    %267 = vector.extract_strided_slice %245 {offsets = [7, 0], sizes = [1, 32], strides = [1, 1]} : vector<16x32xf32> to vector<1x32xf32>
    %268 = vector.extract_strided_slice %245 {offsets = [15, 0], sizes = [1, 32], strides = [1, 1]} : vector<16x32xf32> to vector<1x32xf32>
    %269 = tpu.concatenate %267, %268 in 0 : vector<1x32xf32>, vector<1x32xf32> -> vector<2x32xf32>
    %270 = tpu.concatenate %248, %251, %254, %257, %260, %263, %266, %269 in 1 : vector<2x32xf32>, vector<2x32xf32>, vector<2x32xf32>, vector<2x32xf32>, vector<2x32xf32>, vector<2x32xf32>, vector<2x32xf32>, vector<2x32xf32> -> vector<2x256xf32>
    %c0_86 = arith.constant 0 : index
    %c0_87 = arith.constant 0 : index
    %271 = vector.load %arg16[%c0_86, %c0_87] : memref<256x16xf32, #tpu.memory_space<vmem>>, vector<256x16xf32>
    %cst_88 = arith.constant dense<0.000000e+00> : vector<2x16xf32>
    %272 = tpu.matmul %270, %271, %cst_88 {dimension_numbers = #tpu.dot_dimension_numbers<[1], [0], [0], [1], [0, 0, 1, 1], [], []>} : vector<2x256xf32>, vector<256x16xf32>, vector<2x16xf32> -> vector<2x16xf32>
    %c0_89 = arith.constant 0 : index
    %c0_90 = arith.constant 0 : index
    %273 = vector.load %arg17[%c0_89, %c0_90] : memref<1x16xf32, #tpu.memory_space<vmem>>, vector<1x16xf32>
    %274 = vector.broadcast %273 : vector<1x16xf32> to vector<2x16xf32>
    %275 = arith.addf %272, %274 : vector<2x16xf32>
    %cst_91 = arith.constant dense<0.000000e+00> : vector<16xf32>
    %276 = vector.multi_reduction <add>, %275, %cst_91 [0] : vector<2x16xf32> to vector<16xf32>
    %277 = vector.shape_cast %276 : vector<16xf32> to vector<1x16xf32>
    %cst_92 = arith.constant 2.000000e+00 : f32
    %278 = vector.broadcast %cst_92 : f32 to vector<1x16xf32>
    %279 = arith.divf %277, %278 : vector<1x16xf32>
    %280 = vector.broadcast %279 : vector<1x16xf32> to vector<2x16xf32>
    %281 = arith.subf %275, %280 : vector<2x16xf32>
    %282 = arith.mulf %281, %281 : vector<2x16xf32>
    %cst_93 = arith.constant dense<0.000000e+00> : vector<16xf32>
    %283 = vector.multi_reduction <add>, %282, %cst_93 [0] : vector<2x16xf32> to vector<16xf32>
    %284 = vector.shape_cast %283 : vector<16xf32> to vector<1x16xf32>
    %cst_94 = arith.constant 2.000000e+00 : f32
    %285 = vector.broadcast %cst_94 : f32 to vector<1x16xf32>
    %286 = arith.divf %284, %285 : vector<1x16xf32>
    %287 = vector.broadcast %279 : vector<1x16xf32> to vector<2x16xf32>
    %288 = arith.subf %275, %287 : vector<2x16xf32>
    %cst_95 = arith.constant 9.99999974E-6 : f32
    %289 = vector.broadcast %cst_95 : f32 to vector<1x16xf32>
    %290 = arith.addf %286, %289 : vector<1x16xf32>
    %291 = math.rsqrt %290 : vector<1x16xf32>
    %292 = vector.broadcast %291 : vector<1x16xf32> to vector<2x16xf32>
    %293 = arith.mulf %288, %292 : vector<2x16xf32>
    %c0_96 = arith.constant 0 : index
    %c0_97 = arith.constant 0 : index
    %294 = vector.load %arg18[%c0_96, %c0_97] : memref<1x16xf32, #tpu.memory_space<vmem>>, vector<1x16xf32>
    %295 = vector.broadcast %294 : vector<1x16xf32> to vector<2x16xf32>
    %296 = arith.mulf %293, %295 : vector<2x16xf32>
    %c0_98 = arith.constant 0 : index
    %c0_99 = arith.constant 0 : index
    %297 = vector.load %arg19[%c0_98, %c0_99] : memref<1x16xf32, #tpu.memory_space<vmem>>, vector<1x16xf32>
    %298 = vector.broadcast %297 : vector<1x16xf32> to vector<2x16xf32>
    %299 = arith.addf %296, %298 : vector<2x16xf32>
    %c0_100 = arith.constant 0 : index
    %c0_101 = arith.constant 0 : index
    %300 = vector.load %arg20[%c0_100, %c0_101] : memref<2x16xf32, #tpu.memory_space<vmem>>, vector<2x16xf32>
    tpu.vector_store %arg20[%c0_100, %c0_101], %299 {strides = array<i32>} : memref<2x16xf32, #tpu.memory_space<vmem>>, vector<2x16xf32>,
    return
  }
  func.func @transform_0(%arg0: i32) -> (i32, i32) {
    %c0_i32 = arith.constant 0 : i32
    %c0_i32_0 = arith.constant 0 : i32
    %c0_i32_1 = arith.constant 0 : i32
    return %c0_i32, %c0_i32_0 : i32, i32
  }
  func.func @transform_1(%arg0: i32) -> (i32, i32) {
    %c0_i32 = arith.constant 0 : i32
    %c0_i32_0 = arith.constant 0 : i32
    %c0_i32_1 = arith.constant 0 : i32
    return %c0_i32, %c0_i32_0 : i32, i32
  }
  func.func @transform_2(%arg0: i32) -> (i32, i32) {
    %c0_i32 = arith.constant 0 : i32
    %c0_i32_0 = arith.constant 0 : i32
    %c0_i32_1 = arith.constant 0 : i32
    return %c0_i32, %c0_i32_0 : i32, i32
  }
  func.func @transform_3(%arg0: i32) -> (i32, i32) {
    %c0_i32 = arith.constant 0 : i32
    %c0_i32_0 = arith.constant 0 : i32
    %c0_i32_1 = arith.constant 0 : i32
    return %c0_i32, %c0_i32_0 : i32, i32
  }
  func.func @transform_4(%arg0: i32) -> (i32, i32) {
    %c0_i32 = arith.constant 0 : i32
    %c0_i32_0 = arith.constant 0 : i32
    %c0_i32_1 = arith.constant 0 : i32
    return %c0_i32, %c0_i32_0 : i32, i32
  }
  func.func @transform_5(%arg0: i32) -> (i32, i32) {
    %c0_i32 = arith.constant 0 : i32
    %c0_i32_0 = arith.constant 0 : i32
    %c0_i32_1 = arith.constant 0 : i32
    return %c0_i32, %c0_i32_0 : i32, i32
  }
  func.func @transform_6(%arg0: i32) -> (i32, i32) {
    %c0_i32 = arith.constant 0 : i32
    %c0_i32_0 = arith.constant 0 : i32
    %c0_i32_1 = arith.constant 0 : i32
    return %c0_i32, %c0_i32_0 : i32, i32
  }
  func.func @transform_7(%arg0: i32) -> (i32, i32) {
    %c0_i32 = arith.constant 0 : i32
    %c0_i32_0 = arith.constant 0 : i32
    %c0_i32_1 = arith.constant 0 : i32
    return %c0_i32, %c0_i32_0 : i32, i32
  }
  func.func @transform_8(%arg0: i32) -> (i32, i32) {
    %c0_i32 = arith.constant 0 : i32
    %c0_i32_0 = arith.constant 0 : i32
    %c0_i32_1 = arith.constant 0 : i32
    return %c0_i32, %c0_i32_0 : i32, i32
  }
  func.func @transform_9(%arg0: i32) -> (i32, i32) {
    %c0_i32 = arith.constant 0 : i32
    %c0_i32_0 = arith.constant 0 : i32
    %c0_i32_1 = arith.constant 0 : i32
    return %c0_i32, %c0_i32_0 : i32, i32
  }
  func.func @transform_10(%arg0: i32) -> (i32, i32) {
    %c0_i32 = arith.constant 0 : i32
    %c0_i32_0 = arith.constant 0 : i32
    %c0_i32_1 = arith.constant 0 : i32
    return %c0_i32, %c0_i32_0 : i32, i32
  }
  func.func @transform_11(%arg0: i32) -> (i32, i32) {
    %c0_i32 = arith.constant 0 : i32
    %c0_i32_0 = arith.constant 0 : i32
    %c0_i32_1 = arith.constant 0 : i32
    return %c0_i32, %c0_i32_0 : i32, i32
  }
  func.func @transform_12(%arg0: i32) -> (i32, i32) {
    %c0_i32 = arith.constant 0 : i32
    %c0_i32_0 = arith.constant 0 : i32
    %c0_i32_1 = arith.constant 0 : i32
    return %c0_i32, %c0_i32_0 : i32, i32
  }
  func.func @transform_13(%arg0: i32) -> (i32, i32) {
    %c0_i32 = arith.constant 0 : i32
    %c0_i32_0 = arith.constant 0 : i32
    %c0_i32_1 = arith.constant 0 : i32
    return %c0_i32, %c0_i32_0 : i32, i32
  }
  func.func @transform_14(%arg0: i32) -> (i32, i32) {
    %c0_i32 = arith.constant 0 : i32
    %c0_i32_0 = arith.constant 0 : i32
    %c0_i32_1 = arith.constant 0 : i32
    return %c0_i32, %c0_i32_0 : i32, i32
  }
  func.func @transform_15(%arg0: i32) -> (i32, i32) {
    %c0_i32 = arith.constant 0 : i32
    %c0_i32_0 = arith.constant 0 : i32
    %c0_i32_1 = arith.constant 0 : i32
    return %c0_i32, %c0_i32_0 : i32, i32
  }
  func.func @transform_16(%arg0: i32) -> (i32, i32) {
    %c0_i32 = arith.constant 0 : i32
    %c0_i32_0 = arith.constant 0 : i32
    %c0_i32_1 = arith.constant 0 : i32
    return %c0_i32, %c0_i32_0 : i32, i32
  }
  func.func @transform_17(%arg0: i32) -> (i32, i32) {
    %c0_i32 = arith.constant 0 : i32
    %c0_i32_0 = arith.constant 0 : i32
    %c0_i32_1 = arith.constant 0 : i32
    return %c0_i32, %c0_i32_0 : i32, i32
  }
  func.func @transform_18(%arg0: i32) -> (i32, i32) {
    %c0_i32 = arith.constant 0 : i32
    %c0_i32_0 = arith.constant 0 : i32
    %c0_i32_1 = arith.constant 0 : i32
    return %c0_i32, %c0_i32_0 : i32, i32
  }
  func.func @transform_19(%arg0: i32) -> (i32, i32) {
    %c0_i32 = arith.constant 0 : i32
    %c0_i32_0 = arith.constant 0 : i32
    %c0_i32_1 = arith.constant 0 : i32
    return %c0_i32, %c0_i32_0 : i32, i32
  }
}

</mosaic_0001>

<llo_original>
// kernel: transformer_forward.1
$region0: #{transformer_forward.1}
  #allocation0 [shape = 'u32[]', space=smem, size = 0x4, offset = 0x4, fixed_abs, tag = 'smem constant byte address 0x4 - core index']
  #allocation1 [shape = 'u32[144,128]{1,0:T(1,128)}', space=vmem, size = 0x12000, scoped, tag = 'internal scratch']
  %s0 = inlined_call_operand.vmem [shape: s32[16,1], index: 0, kind: input, shape index: {}]
  %s1 = inlined_call_operand.vmem [shape: s32[2,8], index: 1, kind: input, shape index: {}]
  %s2 = inlined_call_operand.vmem [shape: f32[64,32], index: 2, kind: input, shape index: {}]
  %s3 = inlined_call_operand.vmem [shape: f32[8,32], index: 3, kind: input, shape index: {}]
  %s4 = inlined_call_operand.vmem [shape: f32[32,96], index: 4, kind: input, shape index: {}]
  %s5 = inlined_call_operand.vmem [shape: f32[32,32], index: 5, kind: input, shape index: {}]
  %s6 = inlined_call_operand.vmem [shape: f32[1,32], index: 6, kind: input, shape index: {}]
  %s7 = inlined_call_operand.vmem [shape: f32[1,32], index: 7, kind: input, shape index: {}]
  %s8 = inlined_call_operand.vmem [shape: f32[1,32], index: 8, kind: input, shape index: {}]
  %s9 = inlined_call_operand.vmem [shape: f32[32,128], index: 9, kind: input, shape index: {}]
  %s10 = inlined_call_operand.vmem [shape: f32[1,128], index: 10, kind: input, shape index: {}]
  %s11 = inlined_call_operand.vmem [shape: f32[128,32], index: 11, kind: input, shape index: {}]
  %s12 = inlined_call_operand.vmem [shape: f32[1,32], index: 12, kind: input, shape index: {}]
  %s13 = inlined_call_operand.vmem [shape: f32[1,32], index: 13, kind: input, shape index: {}]
  %s14 = inlined_call_operand.vmem [shape: f32[1,32], index: 14, kind: input, shape index: {}]
  %s15 = inlined_call_operand.vmem [shape: f32[256,16], index: 15, kind: input, shape index: {}]
  %s16 = inlined_call_operand.vmem [shape: f32[1,16], index: 16, kind: input, shape index: {}]
  %s17 = inlined_call_operand.vmem [shape: f32[1,16], index: 17, kind: input, shape index: {}]
  %s18 = inlined_call_operand.vmem [shape: f32[1,16], index: 18, kind: input, shape index: {}]
  %s19 = inlined_call_operand.hbm [shape: f32[2,16], index: 19, kind: output, shape index: {}]
  %s20 = sld [smem:[#allocation0]]
  $region86: #{transformer_forward.1} parent=0
    _
  %s22 = ssub.s32 1, %s20
  %s23 = scalar_select 0, %s22, %s20
  $region1: #{transformer_forward.1} parent=0
    #allocation2 [shape = 'u8[1024]{0}', space=vmem, size = 0x400, scoped, tag = 'output window, operand 0, single buffered']
    #allocation3 [shape = 's32[1]{0}', space=sflag, size = 0x4, scoped, tag = 'scoped memory for transformer_forward.1']
    %24 = vsyncpa [#allocation3], 0
    // Predicated region
    $region2: #{transformer_forward.1} parent=1 // pred_check
      _
    $region3: #{transformer_forward.1} parent=1 // pred_check_branch
      %26 = sbr.rel (0) target = $region5
    $region4: #{transformer_forward.1} parent=1 // pred_region
      _
    $region5: #{transformer_forward.1} parent=1 // pred_fallthru
      _
    // Predicated region
    $region6: #{transformer_forward.1} parent=1 // pred_check
      _
    $region7: #{transformer_forward.1} parent=1 // pred_check_branch
      %28 = sbr.rel (0) target = $region9
    $region8: #{transformer_forward.1} parent=1 // pred_region
      _
    $region9: #{transformer_forward.1} parent=1 // pred_fallthru
      _
    // Predicated region
    $region10: #{transformer_forward.1} parent=1 // pred_check
      _
    $region11: #{transformer_forward.1} parent=1 // pred_check_branch
      %30 = sbr.rel (0) target = $region13
    $region12: #{transformer_forward.1} parent=1 // pred_region
      _
    $region13: #{transformer_forward.1} parent=1 // pred_fallthru
      _
    // Predicated region
    $region14: #{transformer_forward.1} parent=1 // pred_check
      _
    $region15: #{transformer_forward.1} parent=1 // pred_check_branch
      %32 = sbr.rel (0) target = $region17
    $region16: #{transformer_forward.1} parent=1 // pred_region
      _
    $region17: #{transformer_forward.1} parent=1 // pred_fallthru
      _
    // Predicated region
    $region18: #{transformer_forward.1} parent=1 // pred_check
      _
    $region19: #{transformer_forward.1} parent=1 // pred_check_branch
      %34 = sbr.rel (0) target = $region21
    $region20: #{transformer_forward.1} parent=1 // pred_region
      _
    $region21: #{transformer_forward.1} parent=1 // pred_fallthru
      _
    // Predicated region
    $region22: #{transformer_forward.1} parent=1 // pred_check
      _
    $region23: #{transformer_forward.1} parent=1 // pred_check_branch
      %36 = sbr.rel (0) target = $region25
    $region24: #{transformer_forward.1} parent=1 // pred_region
      _
    $region25: #{transformer_forward.1} parent=1 // pred_fallthru
      _
    // Predicated region
    $region26: #{transformer_forward.1} parent=1 // pred_check
      _
    $region27: #{transformer_forward.1} parent=1 // pred_check_branch
      %38 = sbr.rel (0) target = $region29
    $region28: #{transformer_forward.1} parent=1 // pred_region
      _
    $region29: #{transformer_forward.1} parent=1 // pred_fallthru
      _
    // Predicated region
    $region30: #{transformer_forward.1} parent=1 // pred_check
      _
    $region31: #{transformer_forward.1} parent=1 // pred_check_branch
      %40 = sbr.rel (0) target = $region33
    $region32: #{transformer_forward.1} parent=1 // pred_region
      _
    $region33: #{transformer_forward.1} parent=1 // pred_fallthru
      _
    // Predicated region
    $region34: #{transformer_forward.1} parent=1 // pred_check
      _
    $region35: #{transformer_forward.1} parent=1 // pred_check_branch
      %42 = sbr.rel (0) target = $region37
    $region36: #{transformer_forward.1} parent=1 // pred_region
      _
    $region37: #{transformer_forward.1} parent=1 // pred_fallthru
      _
    // Predicated region
    $region38: #{transformer_forward.1} parent=1 // pred_check
      _
    $region39: #{transformer_forward.1} parent=1 // pred_check_branch
      %44 = sbr.rel (0) target = $region41
    $region40: #{transformer_forward.1} parent=1 // pred_region
      _
    $region41: #{transformer_forward.1} parent=1 // pred_fallthru
      _
    // Predicated region
    $region42: #{transformer_forward.1} parent=1 // pred_check
      _
    $region43: #{transformer_forward.1} parent=1 // pred_check_branch
      %46 = sbr.rel (0) target = $region45
    $region44: #{transformer_forward.1} parent=1 // pred_region
      _
    $region45: #{transformer_forward.1} parent=1 // pred_fallthru
      _
    // Predicated region
    $region46: #{transformer_forward.1} parent=1 // pred_check
      _
    $region47: #{transformer_forward.1} parent=1 // pred_check_branch
      %48 = sbr.rel (0) target = $region49
    $region48: #{transformer_forward.1} parent=1 // pred_region
      _
    $region49: #{transformer_forward.1} parent=1 // pred_fallthru
      _
    // Predicated region
    $region50: #{transformer_forward.1} parent=1 // pred_check
      _
    $region51: #{transformer_forward.1} parent=1 // pred_check_branch
      %50 = sbr.rel (0) target = $region53
    $region52: #{transformer_forward.1} parent=1 // pred_region
      _
    $region53: #{transformer_forward.1} parent=1 // pred_fallthru
      _
    // Predicated region
    $region54: #{transformer_forward.1} parent=1 // pred_check
      _
    $region55: #{transformer_forward.1} parent=1 // pred_check_branch
      %52 = sbr.rel (0) target = $region57
    $region56: #{transformer_forward.1} parent=1 // pred_region
      _
    $region57: #{transformer_forward.1} parent=1 // pred_fallthru
      _
    // Predicated region
    $region58: #{transformer_forward.1} parent=1 // pred_check
      _
    $region59: #{transformer_forward.1} parent=1 // pred_check_branch
      %54 = sbr.rel (0) target = $region61
    $region60: #{transformer_forward.1} parent=1 // pred_region
      _
    $region61: #{transformer_forward.1} parent=1 // pred_fallthru
      _
    // Predicated region
    $region62: #{transformer_forward.1} parent=1 // pred_check
      _
    $region63: #{transformer_forward.1} parent=1 // pred_check_branch
      %56 = sbr.rel (0) target = $region65
    $region64: #{transformer_forward.1} parent=1 // pred_region
      _
    $region65: #{transformer_forward.1} parent=1 // pred_fallthru
      _
    // Predicated region
    $region66: #{transformer_forward.1} parent=1 // pred_check
      _
    $region67: #{transformer_forward.1} parent=1 // pred_check_branch
      %58 = sbr.rel (0) target = $region69
    $region68: #{transformer_forward.1} parent=1 // pred_region
      _
    $region69: #{transformer_forward.1} parent=1 // pred_fallthru
      _
    // Predicated region
    $region70: #{transformer_forward.1} parent=1 // pred_check
      _
    $region71: #{transformer_forward.1} parent=1 // pred_check_branch
      %60 = sbr.rel (0) target = $region73
    $region72: #{transformer_forward.1} parent=1 // pred_region
      _
    $region73: #{transformer_forward.1} parent=1 // pred_fallthru
      _
    // Predicated region
    $region74: #{transformer_forward.1} parent=1 // pred_check
      _
    $region75: #{transformer_forward.1} parent=1 // pred_check_branch
      %62 = sbr.rel (0) target = $region77
    $region76: #{transformer_forward.1} parent=1 // pred_region
      _
    $region77: #{transformer_forward.1} parent=1 // pred_fallthru
      _
    %v63 = vld [vmem:[%s0] sm:$0xff]
    %v64 = vld [vmem:[%s0 + $0x8] sm:$0xff]
    %v65 = vlaneseq
    %v66 = vand.u32 %v65, 127
    %67 = vset.pattern.permute.xlu0 0
    %68 = vperm.xlu0 %67, %v63
    %v69 = vpop.permute.xlu0 %68
    %70 = vset.pattern.permute.xlu0 0
    %71 = vperm.xlu0 %70, %v64
    %v72 = vpop.permute.xlu0 %71
    %vm73 = vcmp.eq.s32.totalorder %v69, %v66
    %vm74 = vcmp.eq.s32.totalorder %v72, %v66
    %v75 = vsel %vm73, 1, 0
    %v76 = vsel %vm74, 1, 0
    %v77 = vcvt.s32.f32 %v75
    %v78 = vcvt.s32.f32 %v76
    %v79 = vld [vmem:[%s2] sm:$0xff]
    %v80 = vld [vmem:[%s2 + $0x8] sm:$0xff]
    %v81 = vld [vmem:[%s2 + $0x10] sm:$0xff]
    %v82 = vld [vmem:[%s2 + $0x18] sm:$0xff]
    %v83 = vld [vmem:[%s2 + $0x20] sm:$0xff]
    %v84 = vld [vmem:[%s2 + $0x28] sm:$0xff]
    %v85 = vld [vmem:[%s2 + $0x30] sm:$0xff]
    %v86 = vld [vmem:[%s2 + $0x38] sm:$0xff]
    %v87 = vld [vmem:[%s3] sm:$0xff]
    %vm88 = vcmask 523264
    %v90 = vsel %vm88, %v77, 0
    %v93 = vsel %vm88, %v78, 0
    %95 = vmatprep.subr.mxu0 0.0
    %96 = vmatpush1.msra.mxu0 %v79
    %97 = vmatprep.subr.mxu0 0.0
    %98 = vmatpush1.msra.mxu0 %v80
    %99 = vmatprep.subr.mxu0 0.0
    %100 = vmatpush1.msra.mxu0 %v81
    %101 = vmatprep.subr.mxu0 0.0
    %102 = vmatpush1.msra.mxu0 %v82
    %103 = vmatprep.subr.mxu0 0.0
    %104 = vmatpush1.msra.mxu0 %v83
    %105 = vmatprep.subr.mxu0 0.0
    %106 = vmatpush1.msra.mxu0 %v84
    %107 = vmatprep.subr.mxu0 0.0
    %108 = vmatpush1.msra.mxu0 %v85
    %109 = vmatprep.subr.mxu0 0.0
    %110 = vmatpush1.msra.mxu0 %v86
    %111 = vmatprep.subr.mxu0 0.0
    %112 = vmatpush1.msra.mxu0 0.0
    %113 = vmatprep.subr.mxu0 0.0
    %114 = vmatpush1.msra.mxu0 0.0
    %115 = vmatprep.subr.mxu0 0.0
    %116 = vmatpush1.msra.mxu0 0.0
    %117 = vmatprep.subr.mxu0 0.0
    %118 = vmatpush1.msra.mxu0 0.0
    %119 = vmatprep.subr.mxu0 0.0
    %120 = vmatpush1.msra.mxu0 0.0
    %121 = vmatprep.subr.mxu0 0.0
    %122 = vmatpush1.msra.mxu0 0.0
    %123 = vmatprep.subr.mxu0 0.0
    %124 = vmatpush1.msra.mxu0 0.0
    %125 = vmatprep.subr.mxu0 0.0
    %126 = vmatpush1.msra.mxu0 0.0
    %127 = vmatprep.subr.mxu0 0.0
    %128 = vmatpush1.msra.mxu0 0.0
    %129 = vmatprep.subr.mxu0 0.0
    %130 = vmatpush1.msra.mxu0 0.0
    %131 = vmatprep.subr.mxu0 0.0
    %132 = vmatpush1.msra.mxu0 0.0
    %133 = vmatprep.subr.mxu0 0.0
    %134 = vmatpush1.msra.mxu0 0.0
    %135 = vmatprep.subr.mxu0 0.0
    %136 = vmatpush1.msra.mxu0 0.0
    %137 = vmatprep.subr.mxu0 0.0
    %138 = vmatpush1.msra.mxu0 0.0
    %139 = vmatprep.subr.mxu0 0.0
    %140 = vmatpush1.msra.mxu0 0.0
    %141 = vmatprep.subr.mxu0 0.0
    %142 = vmatpush1.msra.mxu0 0.0
    %143 = vmatprep.subr.mxu0 0.0
    %144 = vmatpush1.msra.mxu0 0.0
    %145 = vmatprep.subr.mxu0 0.0
    %146 = vmatpush1.msra.mxu0 0.0
    %147 = vmatprep.subr.mxu0 0.0
    %148 = vmatpush1.msra.mxu0 0.0
    %149 = vmatprep.subr.mxu0 0.0
    %150 = vmatpush1.msra.mxu0 0.0
    %151 = vmatprep.subr.mxu0 0.0
    %152 = vmatpush1.msra.mxu0 0.0
    %153 = vmatprep.subr.mxu0 0.0
    %154 = vmatpush1.msra.mxu0 0.0
    %155 = vmatprep.subr.mxu0 0.0
    %156 = vmatpush1.msra.mxu0 0.0
    %157 = vmatprep.subr.mxu0 0.0
    %158 = vmatpush1.msra.mxu0 0.0
    %159 = vmatprep.mubr.f32.mxu0 0.0
    %160 = vmatmul.mubr.f32.gmra.mrb[0].mxu0 %v90
    %v161 = vpop.f32.mrb[0].mxu0
    %v162 = vadd.f32 %v87, %v161
    %v163 = vpop.f32.mrb[0].mxu0
    %164 = vmatprep.mubr.f32.mxu0 0.0
    %165 = vmatmul.mubr.f32.gmra.mrb[0].mxu0 %v93
    %v166 = vpop.f32.mrb[0].mxu0
    %v167 = vadd.f32 %v87, %v166
    %v168 = vpop.f32.mrb[0].mxu0
    %169 = vdwg.mxu0
    %v170 = vld [vmem:[%s1] sm:$0x3]
    %vm171 = vcmp.eq.s32.totalorder %v170, 0
    %v172 = vsel %vm171, -1e+20, 0.0
    %v173 = vld [vmem:[%s4] sm:$0xff]
    %v174 = vld [vmem:[%s4 + $0x8] sm:$0xff]
    %v175 = vld [vmem:[%s4 + $0x10] sm:$0xff]
    %v176 = vld [vmem:[%s4 + $0x18] sm:$0xff]
    %vm177 = vcmask 261120
    %v179 = vsel %vm177, %v162, 0
    %v182 = vsel %vm177, %v167, 0
    %184 = vmatprep.subr.mxu0 0.0
    %185 = vmatpush1.msra.mxu0 %v173
    %186 = vmatprep.subr.mxu0 0.0
    %187 = vmatpush1.msra.mxu0 %v174
    %188 = vmatprep.subr.mxu0 0.0
    %189 = vmatpush1.msra.mxu0 %v175
    %190 = vmatprep.subr.mxu0 0.0
    %191 = vmatpush1.msra.mxu0 %v176
    %192 = vmatprep.subr.mxu0 0.0
    %193 = vmatpush1.msra.mxu0 0.0
    %194 = vmatprep.subr.mxu0 0.0
    %195 = vmatpush1.msra.mxu0 0.0
    %196 = vmatprep.subr.mxu0 0.0
    %197 = vmatpush1.msra.mxu0 0.0
    %198 = vmatprep.subr.mxu0 0.0
    %199 = vmatpush1.msra.mxu0 0.0
    %200 = vmatprep.subr.mxu0 0.0
    %201 = vmatpush1.msra.mxu0 0.0
    %202 = vmatprep.subr.mxu0 0.0
    %203 = vmatpush1.msra.mxu0 0.0
    %204 = vmatprep.subr.mxu0 0.0
    %205 = vmatpush1.msra.mxu0 0.0
    %206 = vmatprep.subr.mxu0 0.0
    %207 = vmatpush1.msra.mxu0 0.0
    %208 = vmatprep.subr.mxu0 0.0
    %209 = vmatpush1.msra.mxu0 0.0
    %210 = vmatprep.subr.mxu0 0.0
    %211 = vmatpush1.msra.mxu0 0.0
    %212 = vmatprep.subr.mxu0 0.0
    %213 = vmatpush1.msra.mxu0 0.0
    %214 = vmatprep.subr.mxu0 0.0
    %215 = vmatpush1.msra.mxu0 0.0
    %216 = vmatprep.subr.mxu0 0.0
    %217 = vmatpush1.msra.mxu0 0.0
    %218 = vmatprep.subr.mxu0 0.0
    %219 = vmatpush1.msra.mxu0 0.0
    %220 = vmatprep.subr.mxu0 0.0
    %221 = vmatpush1.msra.mxu0 0.0
    %222 = vmatprep.subr.mxu0 0.0
    %223 = vmatpush1.msra.mxu0 0.0
    %224 = vmatprep.subr.mxu0 0.0
    %225 = vmatpush1.msra.mxu0 0.0
    %226 = vmatprep.subr.mxu0 0.0
    %227 = vmatpush1.msra.mxu0 0.0
    %228 = vmatprep.subr.mxu0 0.0
    %229 = vmatpush1.msra.mxu0 0.0
    %230 = vmatprep.subr.mxu0 0.0
    %231 = vmatpush1.msra.mxu0 0.0
    %232 = vmatprep.subr.mxu0 0.0
    %233 = vmatpush1.msra.mxu0 0.0
    %234 = vmatprep.subr.mxu0 0.0
    %235 = vmatpush1.msra.mxu0 0.0
    %236 = vmatprep.subr.mxu0 0.0
    %237 = vmatpush1.msra.mxu0 0.0
    %238 = vmatprep.subr.mxu0 0.0
    %239 = vmatpush1.msra.mxu0 0.0
    %240 = vmatprep.subr.mxu0 0.0
    %241 = vmatpush1.msra.mxu0 0.0
    %242 = vmatprep.subr.mxu0 0.0
    %243 = vmatpush1.msra.mxu0 0.0
    %244 = vmatprep.subr.mxu0 0.0
    %245 = vmatpush1.msra.mxu0 0.0
    %246 = vmatprep.subr.mxu0 0.0
    %247 = vmatpush1.msra.mxu0 0.0
    %248 = vmatprep.mubr.f32.mxu0 0.0
    %249 = vmatmul.mubr.f32.gmra.mrb[0].mxu0 %v179
    %v250 = vpop.f32.mrb[0].mxu0
    %v251 = vadd.f32 0.0, %v250
    %v252 = vpop.f32.mrb[0].mxu0
    %253 = vmatprep.mubr.f32.mxu0 0.0
    %254 = vmatmul.mubr.f32.gmra.mrb[0].mxu0 %v182
    %v255 = vpop.f32.mrb[0].mxu0
    %v256 = vadd.f32 0.0, %v255
    %v257 = vpop.f32.mrb[0].mxu0
    %258 = vdwg.mxu0
    %v259 = vlaneseq
    %v260 = vshrl.u32 %v259, 7
    %v261 = vsub.s32 0, %v260
    %v262 = vrot.slane %v172, %v261
    %264 = vrot.lane.b32.xlu0 %v251, 96
    %v265 = vpop.permute.xlu0 %264
    %vm266 = vcmask 64512
    %v267 = vsel %vm266, %v251, 0
    %v269 = vsel %vm266, %v265, 0
    %271 = vmatprep.subr.mxu0 0.0
    %272 = vmatpush1.xpose.msra.mxu0 %v269
    %273 = vmatprep.subr.mxu0 0.0
    %274 = vmatpush1.xpose.msra.mxu0 0.0
    %275 = vmatprep.subr.mxu0 0.0
    %276 = vmatpush1.xpose.msra.mxu0 0.0
    %277 = vmatprep.subr.mxu0 0.0
    %278 = vmatpush1.xpose.msra.mxu0 0.0
    %279 = vmatprep.subr.mxu0 0.0
    %280 = vmatpush1.xpose.msra.mxu0 0.0
    %281 = vmatprep.subr.mxu0 0.0
    %282 = vmatpush1.xpose.msra.mxu0 0.0
    %283 = vmatprep.subr.mxu0 0.0
    %284 = vmatpush1.xpose.msra.mxu0 0.0
    %285 = vmatprep.subr.mxu0 0.0
    %286 = vmatpush1.xpose.msra.mxu0 0.0
    %287 = vmatprep.subr.mxu0 0.0
    %288 = vmatpush1.xpose.msra.mxu0 0.0
    %289 = vmatprep.subr.mxu0 0.0
    %290 = vmatpush1.xpose.msra.mxu0 0.0
    %291 = vmatprep.subr.mxu0 0.0
    %292 = vmatpush1.xpose.msra.mxu0 0.0
    %293 = vmatprep.subr.mxu0 0.0
    %294 = vmatpush1.xpose.msra.mxu0 0.0
    %295 = vmatprep.subr.mxu0 0.0
    %296 = vmatpush1.xpose.msra.mxu0 0.0
    %297 = vmatprep.subr.mxu0 0.0
    %298 = vmatpush1.xpose.msra.mxu0 0.0
    %299 = vmatprep.subr.mxu0 0.0
    %300 = vmatpush1.xpose.msra.mxu0 0.0
    %301 = vmatprep.subr.mxu0 0.0
    %302 = vmatpush1.xpose.msra.mxu0 0.0
    %303 = vmatprep.subr.mxu0 0.0
    %304 = vmatpush1.xpose.msra.mxu0 0.0
    %305 = vmatprep.subr.mxu0 0.0
    %306 = vmatpush1.xpose.msra.mxu0 0.0
    %307 = vmatprep.subr.mxu0 0.0
    %308 = vmatpush1.xpose.msra.mxu0 0.0
    %309 = vmatprep.subr.mxu0 0.0
    %310 = vmatpush1.xpose.msra.mxu0 0.0
    %311 = vmatprep.subr.mxu0 0.0
    %312 = vmatpush1.xpose.msra.mxu0 0.0
    %313 = vmatprep.subr.mxu0 0.0
    %314 = vmatpush1.xpose.msra.mxu0 0.0
    %315 = vmatprep.subr.mxu0 0.0
    %316 = vmatpush1.xpose.msra.mxu0 0.0
    %317 = vmatprep.subr.mxu0 0.0
    %318 = vmatpush1.xpose.msra.mxu0 0.0
    %319 = vmatprep.subr.mxu0 0.0
    %320 = vmatpush1.xpose.msra.mxu0 0.0
    %321 = vmatprep.subr.mxu0 0.0
    %322 = vmatpush1.xpose.msra.mxu0 0.0
    %323 = vmatprep.subr.mxu0 0.0
    %324 = vmatpush1.xpose.msra.mxu0 0.0
    %325 = vmatprep.subr.mxu0 0.0
    %326 = vmatpush1.xpose.msra.mxu0 0.0
    %327 = vmatprep.subr.mxu0 0.0
    %328 = vmatpush1.xpose.msra.mxu0 0.0
    %329 = vmatprep.subr.mxu0 0.0
    %330 = vmatpush1.xpose.msra.mxu0 0.0
    %331 = vmatprep.subr.mxu0 0.0
    %332 = vmatpush1.xpose.msra.mxu0 0.0
    %333 = vmatprep.subr.mxu0 0.0
    %334 = vmatpush1.xpose.msra.mxu0 0.0
    %335 = vmatprep.mubr.f32.mxu0 0.0
    %336 = vmatmul.mubr.f32.gmra.mrb[0].mxu0 %v267
    %v337 = vpop.f32.mrb[0].mxu0
    %v338 = vadd.f32 %v262, %v337
    %v339 = vpop.f32.mrb[0].mxu0
    %340 = vdwg.mxu0
    %v341 = vmul.f32 %v338, 0.17677669
    %v342 = vsel %vm266, %v341, -inf
    %343 = vmax.xlane.f32.xlu0 %v342
    %v344 = vpop.xlane.xlu0 %343
    %v345 = vsub.f32 %v341, %v344
    %v346 = vmul.f32 %v345, 1.442695
    %v347 = vpow.pop %v346
    %v348 = vsel %vm266, %v347, 0.0
    %349 = vadd.xlane.f32.xlu0 %v348
    %v350 = vpop.xlane.xlu0 %349
    %v351 = vrcp.pop %v350
    %v352 = vmul.f32 %v347, %v351
    %353 = vrot.lane.b32.xlu0 %v251, 64
    %v354 = vpop.permute.xlu0 %353
    %v357 = vsel %vm266, %v352, 0
    %359 = vmatprep.subr.mxu0 0.0
    %360 = vmatpush1.msra.mxu0 %v354
    %361 = vmatprep.subr.mxu0 0.0
    %362 = vmatpush1.msra.mxu0 0.0
    %363 = vmatprep.subr.mxu0 0.0
    %364 = vmatpush1.msra.mxu0 0.0
    %365 = vmatprep.subr.mxu0 0.0
    %366 = vmatpush1.msra.mxu0 0.0
    %367 = vmatprep.subr.mxu0 0.0
    %368 = vmatpush1.msra.mxu0 0.0
    %369 = vmatprep.subr.mxu0 0.0
    %370 = vmatpush1.msra.mxu0 0.0
    %371 = vmatprep.subr.mxu0 0.0
    %372 = vmatpush1.msra.mxu0 0.0
    %373 = vmatprep.subr.mxu0 0.0
    %374 = vmatpush1.msra.mxu0 0.0
    %375 = vmatprep.subr.mxu0 0.0
    %376 = vmatpush1.msra.mxu0 0.0
    %377 = vmatprep.subr.mxu0 0.0
    %378 = vmatpush1.msra.mxu0 0.0
    %379 = vmatprep.subr.mxu0 0.0
    %380 = vmatpush1.msra.mxu0 0.0
    %381 = vmatprep.subr.mxu0 0.0
    %382 = vmatpush1.msra.mxu0 0.0
    %383 = vmatprep.subr.mxu0 0.0
    %384 = vmatpush1.msra.mxu0 0.0
    %385 = vmatprep.subr.mxu0 0.0
    %386 = vmatpush1.msra.mxu0 0.0
    %387 = vmatprep.subr.mxu0 0.0
    %388 = vmatpush1.msra.mxu0 0.0
    %389 = vmatprep.subr.mxu0 0.0
    %390 = vmatpush1.msra.mxu0 0.0
    %391 = vmatprep.subr.mxu0 0.0
    %392 = vmatpush1.msra.mxu0 0.0
    %393 = vmatprep.subr.mxu0 0.0
    %394 = vmatpush1.msra.mxu0 0.0
    %395 = vmatprep.subr.mxu0 0.0
    %396 = vmatpush1.msra.mxu0 0.0
    %397 = vmatprep.subr.mxu0 0.0
    %398 = vmatpush1.msra.mxu0 0.0
    %399 = vmatprep.subr.mxu0 0.0
    %400 = vmatpush1.msra.mxu0 0.0
    %401 = vmatprep.subr.mxu0 0.0
    %402 = vmatpush1.msra.mxu0 0.0
    %403 = vmatprep.subr.mxu0 0.0
    %404 = vmatpush1.msra.mxu0 0.0
    %405 = vmatprep.subr.mxu0 0.0
    %406 = vmatpush1.msra.mxu0 0.0
    %407 = vmatprep.subr.mxu0 0.0
    %408 = vmatpush1.msra.mxu0 0.0
    %409 = vmatprep.subr.mxu0 0.0
    %410 = vmatpush1.msra.mxu0 0.0
    %411 = vmatprep.subr.mxu0 0.0
    %412 = vmatpush1.msra.mxu0 0.0
    %413 = vmatprep.subr.mxu0 0.0
    %414 = vmatpush1.msra.mxu0 0.0
    %415 = vmatprep.subr.mxu0 0.0
    %416 = vmatpush1.msra.mxu0 0.0
    %417 = vmatprep.subr.mxu0 0.0
    %418 = vmatpush1.msra.mxu0 0.0
    %419 = vmatprep.subr.mxu0 0.0
    %420 = vmatpush1.msra.mxu0 0.0
    %421 = vmatprep.subr.mxu0 0.0
    %422 = vmatpush1.msra.mxu0 0.0
    %423 = vmatprep.mubr.f32.mxu0 0.0
    %424 = vmatmul.mubr.f32.gmra.mrb[0].mxu0 %v357
    %v425 = vpop.f32.mrb[0].mxu0
    %v426 = vadd.f32 0.0, %v425
    %v427 = vpop.f32.mrb[0].mxu0
    %428 = vdwg.mxu0
    %429 = vrot.lane.b32.xlu0 %v251, 120
    %v430 = vpop.permute.xlu0 %429
    %431 = vrot.lane.b32.xlu0 %v251, 88
    %v432 = vpop.permute.xlu0 %431
    %v433 = vsel %vm266, %v430, 0
    %v435 = vsel %vm266, %v432, 0
    %437 = vmatprep.subr.mxu0 0.0
    %438 = vmatpush1.xpose.msra.mxu0 %v435
    %439 = vmatprep.subr.mxu0 0.0
    %440 = vmatpush1.xpose.msra.mxu0 0.0
    %441 = vmatprep.subr.mxu0 0.0
    %442 = vmatpush1.xpose.msra.mxu0 0.0
    %443 = vmatprep.subr.mxu0 0.0
    %444 = vmatpush1.xpose.msra.mxu0 0.0
    %445 = vmatprep.subr.mxu0 0.0
    %446 = vmatpush1.xpose.msra.mxu0 0.0
    %447 = vmatprep.subr.mxu0 0.0
    %448 = vmatpush1.xpose.msra.mxu0 0.0
    %449 = vmatprep.subr.mxu0 0.0
    %450 = vmatpush1.xpose.msra.mxu0 0.0
    %451 = vmatprep.subr.mxu0 0.0
    %452 = vmatpush1.xpose.msra.mxu0 0.0
    %453 = vmatprep.subr.mxu0 0.0
    %454 = vmatpush1.xpose.msra.mxu0 0.0
    %455 = vmatprep.subr.mxu0 0.0
    %456 = vmatpush1.xpose.msra.mxu0 0.0
    %457 = vmatprep.subr.mxu0 0.0
    %458 = vmatpush1.xpose.msra.mxu0 0.0
    %459 = vmatprep.subr.mxu0 0.0
    %460 = vmatpush1.xpose.msra.mxu0 0.0
    %461 = vmatprep.subr.mxu0 0.0
    %462 = vmatpush1.xpose.msra.mxu0 0.0
    %463 = vmatprep.subr.mxu0 0.0
    %464 = vmatpush1.xpose.msra.mxu0 0.0
    %465 = vmatprep.subr.mxu0 0.0
    %466 = vmatpush1.xpose.msra.mxu0 0.0
    %467 = vmatprep.subr.mxu0 0.0
    %468 = vmatpush1.xpose.msra.mxu0 0.0
    %469 = vmatprep.subr.mxu0 0.0
    %470 = vmatpush1.xpose.msra.mxu0 0.0
    %471 = vmatprep.subr.mxu0 0.0
    %472 = vmatpush1.xpose.msra.mxu0 0.0
    %473 = vmatprep.subr.mxu0 0.0
    %474 = vmatpush1.xpose.msra.mxu0 0.0
    %475 = vmatprep.subr.mxu0 0.0
    %476 = vmatpush1.xpose.msra.mxu0 0.0
    %477 = vmatprep.subr.mxu0 0.0
    %478 = vmatpush1.xpose.msra.mxu0 0.0
    %479 = vmatprep.subr.mxu0 0.0
    %480 = vmatpush1.xpose.msra.mxu0 0.0
    %481 = vmatprep.subr.mxu0 0.0
    %482 = vmatpush1.xpose.msra.mxu0 0.0
    %483 = vmatprep.subr.mxu0 0.0
    %484 = vmatpush1.xpose.msra.mxu0 0.0
    %485 = vmatprep.subr.mxu0 0.0
    %486 = vmatpush1.xpose.msra.mxu0 0.0
    %487 = vmatprep.subr.mxu0 0.0
    %488 = vmatpush1.xpose.msra.mxu0 0.0
    %489 = vmatprep.subr.mxu0 0.0
    %490 = vmatpush1.xpose.msra.mxu0 0.0
    %491 = vmatprep.subr.mxu0 0.0
    %492 = vmatpush1.xpose.msra.mxu0 0.0
    %493 = vmatprep.subr.mxu0 0.0
    %494 = vmatpush1.xpose.msra.mxu0 0.0
    %495 = vmatprep.subr.mxu0 0.0
    %496 = vmatpush1.xpose.msra.mxu0 0.0
    %497 = vmatprep.subr.mxu0 0.0
    %498 = vmatpush1.xpose.msra.mxu0 0.0
    %499 = vmatprep.subr.mxu0 0.0
    %500 = vmatpush1.xpose.msra.mxu0 0.0
    %501 = vmatprep.mubr.f32.mxu0 0.0
    %502 = vmatmul.mubr.f32.gmra.mrb[0].mxu0 %v433
    %v503 = vpop.f32.mrb[0].mxu0
    %v504 = vadd.f32 %v262, %v503
    %v505 = vpop.f32.mrb[0].mxu0
    %506 = vdwg.mxu0
    %v507 = vmul.f32 %v504, 0.17677669
    %v508 = vsel %vm266, %v507, -inf
    %509 = vmax.xlane.f32.xlu0 %v508
    %v510 = vpop.xlane.xlu0 %509
    %v511 = vsub.f32 %v507, %v510
    %v512 = vmul.f32 %v511, 1.442695
    %v513 = vpow.pop %v512
    %v514 = vsel %vm266, %v513, 0.0
    %515 = vadd.xlane.f32.xlu0 %v514
    %v516 = vpop.xlane.xlu0 %515
    %v517 = vrcp.pop %v516
    %v518 = vmul.f32 %v513, %v517
    %519 = vrot.lane.b32.xlu0 %v251, 56
    %v520 = vpop.permute.xlu0 %519
    %v523 = vsel %vm266, %v518, 0
    %525 = vmatprep.subr.mxu0 0.0
    %526 = vmatpush1.msra.mxu0 %v520
    %527 = vmatprep.subr.mxu0 0.0
    %528 = vmatpush1.msra.mxu0 0.0
    %529 = vmatprep.subr.mxu0 0.0
    %530 = vmatpush1.msra.mxu0 0.0
    %531 = vmatprep.subr.mxu0 0.0
    %532 = vmatpush1.msra.mxu0 0.0
    %533 = vmatprep.subr.mxu0 0.0
    %534 = vmatpush1.msra.mxu0 0.0
    %535 = vmatprep.subr.mxu0 0.0
    %536 = vmatpush1.msra.mxu0 0.0
    %537 = vmatprep.subr.mxu0 0.0
    %538 = vmatpush1.msra.mxu0 0.0
    %539 = vmatprep.subr.mxu0 0.0
    %540 = vmatpush1.msra.mxu0 0.0
    %541 = vmatprep.subr.mxu0 0.0
    %542 = vmatpush1.msra.mxu0 0.0
    %543 = vmatprep.subr.mxu0 0.0
    %544 = vmatpush1.msra.mxu0 0.0
    %545 = vmatprep.subr.mxu0 0.0
    %546 = vmatpush1.msra.mxu0 0.0
    %547 = vmatprep.subr.mxu0 0.0
    %548 = vmatpush1.msra.mxu0 0.0
    %549 = vmatprep.subr.mxu0 0.0
    %550 = vmatpush1.msra.mxu0 0.0
    %551 = vmatprep.subr.mxu0 0.0
    %552 = vmatpush1.msra.mxu0 0.0
    %553 = vmatprep.subr.mxu0 0.0
    %554 = vmatpush1.msra.mxu0 0.0
    %555 = vmatprep.subr.mxu0 0.0
    %556 = vmatpush1.msra.mxu0 0.0
    %557 = vmatprep.subr.mxu0 0.0
    %558 = vmatpush1.msra.mxu0 0.0
    %559 = vmatprep.subr.mxu0 0.0
    %560 = vmatpush1.msra.mxu0 0.0
    %561 = vmatprep.subr.mxu0 0.0
    %562 = vmatpush1.msra.mxu0 0.0
    %563 = vmatprep.subr.mxu0 0.0
    %564 = vmatpush1.msra.mxu0 0.0
    %565 = vmatprep.subr.mxu0 0.0
    %566 = vmatpush1.msra.mxu0 0.0
    %567 = vmatprep.subr.mxu0 0.0
    %568 = vmatpush1.msra.mxu0 0.0
    %569 = vmatprep.subr.mxu0 0.0
    %570 = vmatpush1.msra.mxu0 0.0
    %571 = vmatprep.subr.mxu0 0.0
    %572 = vmatpush1.msra.mxu0 0.0
    %573 = vmatprep.subr.mxu0 0.0
    %574 = vmatpush1.msra.mxu0 0.0
    %575 = vmatprep.subr.mxu0 0.0
    %576 = vmatpush1.msra.mxu0 0.0
    %577 = vmatprep.subr.mxu0 0.0
    %578 = vmatpush1.msra.mxu0 0.0
    %579 = vmatprep.subr.mxu0 0.0
    %580 = vmatpush1.msra.mxu0 0.0
    %581 = vmatprep.subr.mxu0 0.0
    %582 = vmatpush1.msra.mxu0 0.0
    %583 = vmatprep.subr.mxu0 0.0
    %584 = vmatpush1.msra.mxu0 0.0
    %585 = vmatprep.subr.mxu0 0.0
    %586 = vmatpush1.msra.mxu0 0.0
    %587 = vmatprep.subr.mxu0 0.0
    %588 = vmatpush1.msra.mxu0 0.0
    %589 = vmatprep.mubr.f32.mxu0 0.0
    %590 = vmatmul.mubr.f32.gmra.mrb[0].mxu0 %v523
    %v591 = vpop.f32.mrb[0].mxu0
    %v592 = vadd.f32 0.0, %v591
    %v593 = vpop.f32.mrb[0].mxu0
    %594 = vdwg.mxu0
    %595 = vrot.lane.b32.xlu0 %v251, 112
    %v596 = vpop.permute.xlu0 %595
    %597 = vrot.lane.b32.xlu0 %v251, 80
    %v598 = vpop.permute.xlu0 %597
    %v599 = vsel %vm266, %v596, 0
    %v601 = vsel %vm266, %v598, 0
    %603 = vmatprep.subr.mxu0 0.0
    %604 = vmatpush1.xpose.msra.mxu0 %v601
    %605 = vmatprep.subr.mxu0 0.0
    %606 = vmatpush1.xpose.msra.mxu0 0.0
    %607 = vmatprep.subr.mxu0 0.0
    %608 = vmatpush1.xpose.msra.mxu0 0.0
    %609 = vmatprep.subr.mxu0 0.0
    %610 = vmatpush1.xpose.msra.mxu0 0.0
    %611 = vmatprep.subr.mxu0 0.0
    %612 = vmatpush1.xpose.msra.mxu0 0.0
    %613 = vmatprep.subr.mxu0 0.0
    %614 = vmatpush1.xpose.msra.mxu0 0.0
    %615 = vmatprep.subr.mxu0 0.0
    %616 = vmatpush1.xpose.msra.mxu0 0.0
    %617 = vmatprep.subr.mxu0 0.0
    %618 = vmatpush1.xpose.msra.mxu0 0.0
    %619 = vmatprep.subr.mxu0 0.0
    %620 = vmatpush1.xpose.msra.mxu0 0.0
    %621 = vmatprep.subr.mxu0 0.0
    %622 = vmatpush1.xpose.msra.mxu0 0.0
    %623 = vmatprep.subr.mxu0 0.0
    %624 = vmatpush1.xpose.msra.mxu0 0.0
    %625 = vmatprep.subr.mxu0 0.0
    %626 = vmatpush1.xpose.msra.mxu0 0.0
    %627 = vmatprep.subr.mxu0 0.0
    %628 = vmatpush1.xpose.msra.mxu0 0.0
    %629 = vmatprep.subr.mxu0 0.0
    %630 = vmatpush1.xpose.msra.mxu0 0.0
    %631 = vmatprep.subr.mxu0 0.0
    %632 = vmatpush1.xpose.msra.mxu0 0.0
    %633 = vmatprep.subr.mxu0 0.0
    %634 = vmatpush1.xpose.msra.mxu0 0.0
    %635 = vmatprep.subr.mxu0 0.0
    %636 = vmatpush1.xpose.msra.mxu0 0.0
    %637 = vmatprep.subr.mxu0 0.0
    %638 = vmatpush1.xpose.msra.mxu0 0.0
    %639 = vmatprep.subr.mxu0 0.0
    %640 = vmatpush1.xpose.msra.mxu0 0.0
    %641 = vmatprep.subr.mxu0 0.0
    %642 = vmatpush1.xpose.msra.mxu0 0.0
    %643 = vmatprep.subr.mxu0 0.0
    %644 = vmatpush1.xpose.msra.mxu0 0.0
    %645 = vmatprep.subr.mxu0 0.0
    %646 = vmatpush1.xpose.msra.mxu0 0.0
    %647 = vmatprep.subr.mxu0 0.0
    %648 = vmatpush1.xpose.msra.mxu0 0.0
    %649 = vmatprep.subr.mxu0 0.0
    %650 = vmatpush1.xpose.msra.mxu0 0.0
    %651 = vmatprep.subr.mxu0 0.0
    %652 = vmatpush1.xpose.msra.mxu0 0.0
    %653 = vmatprep.subr.mxu0 0.0
    %654 = vmatpush1.xpose.msra.mxu0 0.0
    %655 = vmatprep.subr.mxu0 0.0
    %656 = vmatpush1.xpose.msra.mxu0 0.0
    %657 = vmatprep.subr.mxu0 0.0
    %658 = vmatpush1.xpose.msra.mxu0 0.0
    %659 = vmatprep.subr.mxu0 0.0
    %660 = vmatpush1.xpose.msra.mxu0 0.0
    %661 = vmatprep.subr.mxu0 0.0
    %662 = vmatpush1.xpose.msra.mxu0 0.0
    %663 = vmatprep.subr.mxu0 0.0
    %664 = vmatpush1.xpose.msra.mxu0 0.0
    %665 = vmatprep.subr.mxu0 0.0
    %666 = vmatpush1.xpose.msra.mxu0 0.0
    %667 = vmatprep.mubr.f32.mxu0 0.0
    %668 = vmatmul.mubr.f32.gmra.mrb[0].mxu0 %v599
    %v669 = vpop.f32.mrb[0].mxu0
    %v670 = vadd.f32 %v262, %v669
    %v671 = vpop.f32.mrb[0].mxu0
    %672 = vdwg.mxu0
    %v673 = vmul.f32 %v670, 0.17677669
    %v674 = vsel %vm266, %v673, -inf
    %675 = vmax.xlane.f32.xlu0 %v674
    %v676 = vpop.xlane.xlu0 %675
    %v677 = vsub.f32 %v673, %v676
    %v678 = vmul.f32 %v677, 1.442695
    %v679 = vpow.pop %v678
    %v680 = vsel %vm266, %v679, 0.0
    %681 = vadd.xlane.f32.xlu0 %v680
    %v682 = vpop.xlane.xlu0 %681
    %v683 = vrcp.pop %v682
    %v684 = vmul.f32 %v679, %v683
    %685 = vrot.lane.b32.xlu0 %v251, 48
    %v686 = vpop.permute.xlu0 %685
    %v689 = vsel %vm266, %v684, 0
    %691 = vmatprep.subr.mxu0 0.0
    %692 = vmatpush1.msra.mxu0 %v686
    %693 = vmatprep.subr.mxu0 0.0
    %694 = vmatpush1.msra.mxu0 0.0
    %695 = vmatprep.subr.mxu0 0.0
    %696 = vmatpush1.msra.mxu0 0.0
    %697 = vmatprep.subr.mxu0 0.0
    %698 = vmatpush1.msra.mxu0 0.0
    %699 = vmatprep.subr.mxu0 0.0
    %700 = vmatpush1.msra.mxu0 0.0
    %701 = vmatprep.subr.mxu0 0.0
    %702 = vmatpush1.msra.mxu0 0.0
    %703 = vmatprep.subr.mxu0 0.0
    %704 = vmatpush1.msra.mxu0 0.0
    %705 = vmatprep.subr.mxu0 0.0
    %706 = vmatpush1.msra.mxu0 0.0
    %707 = vmatprep.subr.mxu0 0.0
    %708 = vmatpush1.msra.mxu0 0.0
    %709 = vmatprep.subr.mxu0 0.0
    %710 = vmatpush1.msra.mxu0 0.0
    %711 = vmatprep.subr.mxu0 0.0
    %712 = vmatpush1.msra.mxu0 0.0
    %713 = vmatprep.subr.mxu0 0.0
    %714 = vmatpush1.msra.mxu0 0.0
    %715 = vmatprep.subr.mxu0 0.0
    %716 = vmatpush1.msra.mxu0 0.0
    %717 = vmatprep.subr.mxu0 0.0
    %718 = vmatpush1.msra.mxu0 0.0
    %719 = vmatprep.subr.mxu0 0.0
    %720 = vmatpush1.msra.mxu0 0.0
    %721 = vmatprep.subr.mxu0 0.0
    %722 = vmatpush1.msra.mxu0 0.0
    %723 = vmatprep.subr.mxu0 0.0
    %724 = vmatpush1.msra.mxu0 0.0
    %725 = vmatprep.subr.mxu0 0.0
    %726 = vmatpush1.msra.mxu0 0.0
    %727 = vmatprep.subr.mxu0 0.0
    %728 = vmatpush1.msra.mxu0 0.0
    %729 = vmatprep.subr.mxu0 0.0
    %730 = vmatpush1.msra.mxu0 0.0
    %731 = vmatprep.subr.mxu0 0.0
    %732 = vmatpush1.msra.mxu0 0.0
    %733 = vmatprep.subr.mxu0 0.0
    %734 = vmatpush1.msra.mxu0 0.0
    %735 = vmatprep.subr.mxu0 0.0
    %736 = vmatpush1.msra.mxu0 0.0
    %737 = vmatprep.subr.mxu0 0.0
    %738 = vmatpush1.msra.mxu0 0.0
    %739 = vmatprep.subr.mxu0 0.0
    %740 = vmatpush1.msra.mxu0 0.0
    %741 = vmatprep.subr.mxu0 0.0
    %742 = vmatpush1.msra.mxu0 0.0
    %743 = vmatprep.subr.mxu0 0.0
    %744 = vmatpush1.msra.mxu0 0.0
    %745 = vmatprep.subr.mxu0 0.0
    %746 = vmatpush1.msra.mxu0 0.0
    %747 = vmatprep.subr.mxu0 0.0
    %748 = vmatpush1.msra.mxu0 0.0
    %749 = vmatprep.subr.mxu0 0.0
    %750 = vmatpush1.msra.mxu0 0.0
    %751 = vmatprep.subr.mxu0 0.0
    %752 = vmatpush1.msra.mxu0 0.0
    %753 = vmatprep.subr.mxu0 0.0
    %754 = vmatpush1.msra.mxu0 0.0
    %755 = vmatprep.mubr.f32.mxu0 0.0
    %756 = vmatmul.mubr.f32.gmra.mrb[0].mxu0 %v689
    %v757 = vpop.f32.mrb[0].mxu0
    %v758 = vadd.f32 0.0, %v757
    %v759 = vpop.f32.mrb[0].mxu0
    %760 = vdwg.mxu0
    %761 = vrot.lane.b32.xlu0 %v251, 104
    %v762 = vpop.permute.xlu0 %761
    %763 = vrot.lane.b32.xlu0 %v251, 72
    %v764 = vpop.permute.xlu0 %763
    %v765 = vsel %vm266, %v762, 0
    %v767 = vsel %vm266, %v764, 0
    %769 = vmatprep.subr.mxu0 0.0
    %770 = vmatpush1.xpose.msra.mxu0 %v767
    %771 = vmatprep.subr.mxu0 0.0
    %772 = vmatpush1.xpose.msra.mxu0 0.0
    %773 = vmatprep.subr.mxu0 0.0
    %774 = vmatpush1.xpose.msra.mxu0 0.0
    %775 = vmatprep.subr.mxu0 0.0
    %776 = vmatpush1.xpose.msra.mxu0 0.0
    %777 = vmatprep.subr.mxu0 0.0
    %778 = vmatpush1.xpose.msra.mxu0 0.0
    %779 = vmatprep.subr.mxu0 0.0
    %780 = vmatpush1.xpose.msra.mxu0 0.0
    %781 = vmatprep.subr.mxu0 0.0
    %782 = vmatpush1.xpose.msra.mxu0 0.0
    %783 = vmatprep.subr.mxu0 0.0
    %784 = vmatpush1.xpose.msra.mxu0 0.0
    %785 = vmatprep.subr.mxu0 0.0
    %786 = vmatpush1.xpose.msra.mxu0 0.0
    %787 = vmatprep.subr.mxu0 0.0
    %788 = vmatpush1.xpose.msra.mxu0 0.0
    %789 = vmatprep.subr.mxu0 0.0
    %790 = vmatpush1.xpose.msra.mxu0 0.0
    %791 = vmatprep.subr.mxu0 0.0
    %792 = vmatpush1.xpose.msra.mxu0 0.0
    %793 = vmatprep.subr.mxu0 0.0
    %794 = vmatpush1.xpose.msra.mxu0 0.0
    %795 = vmatprep.subr.mxu0 0.0
    %796 = vmatpush1.xpose.msra.mxu0 0.0
    %797 = vmatprep.subr.mxu0 0.0
    %798 = vmatpush1.xpose.msra.mxu0 0.0
    %799 = vmatprep.subr.mxu0 0.0
    %800 = vmatpush1.xpose.msra.mxu0 0.0
    %801 = vmatprep.subr.mxu0 0.0
    %802 = vmatpush1.xpose.msra.mxu0 0.0
    %803 = vmatprep.subr.mxu0 0.0
    %804 = vmatpush1.xpose.msra.mxu0 0.0
    %805 = vmatprep.subr.mxu0 0.0
    %806 = vmatpush1.xpose.msra.mxu0 0.0
    %807 = vmatprep.subr.mxu0 0.0
    %808 = vmatpush1.xpose.msra.mxu0 0.0
    %809 = vmatprep.subr.mxu0 0.0
    %810 = vmatpush1.xpose.msra.mxu0 0.0
    %811 = vmatprep.subr.mxu0 0.0
    %812 = vmatpush1.xpose.msra.mxu0 0.0
    %813 = vmatprep.subr.mxu0 0.0
    %814 = vmatpush1.xpose.msra.mxu0 0.0
    %815 = vmatprep.subr.mxu0 0.0
    %816 = vmatpush1.xpose.msra.mxu0 0.0
    %817 = vmatprep.subr.mxu0 0.0
    %818 = vmatpush1.xpose.msra.mxu0 0.0
    %819 = vmatprep.subr.mxu0 0.0
    %820 = vmatpush1.xpose.msra.mxu0 0.0
    %821 = vmatprep.subr.mxu0 0.0
    %822 = vmatpush1.xpose.msra.mxu0 0.0
    %823 = vmatprep.subr.mxu0 0.0
    %824 = vmatpush1.xpose.msra.mxu0 0.0
    %825 = vmatprep.subr.mxu0 0.0
    %826 = vmatpush1.xpose.msra.mxu0 0.0
    %827 = vmatprep.subr.mxu0 0.0
    %828 = vmatpush1.xpose.msra.mxu0 0.0
    %829 = vmatprep.subr.mxu0 0.0
    %830 = vmatpush1.xpose.msra.mxu0 0.0
    %831 = vmatprep.subr.mxu0 0.0
    %832 = vmatpush1.xpose.msra.mxu0 0.0
    %833 = vmatprep.mubr.f32.mxu0 0.0
    %834 = vmatmul.mubr.f32.gmra.mrb[0].mxu0 %v765
    %v835 = vpop.f32.mrb[0].mxu0
    %v836 = vadd.f32 %v262, %v835
    %v837 = vpop.f32.mrb[0].mxu0
    %838 = vdwg.mxu0
    %v839 = vmul.f32 %v836, 0.17677669
    %v840 = vsel %vm266, %v839, -inf
    %841 = vmax.xlane.f32.xlu0 %v840
    %v842 = vpop.xlane.xlu0 %841
    %v843 = vsub.f32 %v839, %v842
    %v844 = vmul.f32 %v843, 1.442695
    %v845 = vpow.pop %v844
    %v846 = vsel %vm266, %v845, 0.0
    %847 = vadd.xlane.f32.xlu0 %v846
    %v848 = vpop.xlane.xlu0 %847
    %v849 = vrcp.pop %v848
    %v850 = vmul.f32 %v845, %v849
    %851 = vrot.lane.b32.xlu0 %v251, 40
    %v852 = vpop.permute.xlu0 %851
    %v855 = vsel %vm266, %v850, 0
    %857 = vmatprep.subr.mxu0 0.0
    %858 = vmatpush1.msra.mxu0 %v852
    %859 = vmatprep.subr.mxu0 0.0
    %860 = vmatpush1.msra.mxu0 0.0
    %861 = vmatprep.subr.mxu0 0.0
    %862 = vmatpush1.msra.mxu0 0.0
    %863 = vmatprep.subr.mxu0 0.0
    %864 = vmatpush1.msra.mxu0 0.0
    %865 = vmatprep.subr.mxu0 0.0
    %866 = vmatpush1.msra.mxu0 0.0
    %867 = vmatprep.subr.mxu0 0.0
    %868 = vmatpush1.msra.mxu0 0.0
    %869 = vmatprep.subr.mxu0 0.0
    %870 = vmatpush1.msra.mxu0 0.0
    %871 = vmatprep.subr.mxu0 0.0
    %872 = vmatpush1.msra.mxu0 0.0
    %873 = vmatprep.subr.mxu0 0.0
    %874 = vmatpush1.msra.mxu0 0.0
    %875 = vmatprep.subr.mxu0 0.0
    %876 = vmatpush1.msra.mxu0 0.0
    %877 = vmatprep.subr.mxu0 0.0
    %878 = vmatpush1.msra.mxu0 0.0
    %879 = vmatprep.subr.mxu0 0.0
    %880 = vmatpush1.msra.mxu0 0.0
    %881 = vmatprep.subr.mxu0 0.0
    %882 = vmatpush1.msra.mxu0 0.0
    %883 = vmatprep.subr.mxu0 0.0
    %884 = vmatpush1.msra.mxu0 0.0
    %885 = vmatprep.subr.mxu0 0.0
    %886 = vmatpush1.msra.mxu0 0.0
    %887 = vmatprep.subr.mxu0 0.0
    %888 = vmatpush1.msra.mxu0 0.0
    %889 = vmatprep.subr.mxu0 0.0
    %890 = vmatpush1.msra.mxu0 0.0
    %891 = vmatprep.subr.mxu0 0.0
    %892 = vmatpush1.msra.mxu0 0.0
    %893 = vmatprep.subr.mxu0 0.0
    %894 = vmatpush1.msra.mxu0 0.0
    %895 = vmatprep.subr.mxu0 0.0
    %896 = vmatpush1.msra.mxu0 0.0
    %897 = vmatprep.subr.mxu0 0.0
    %898 = vmatpush1.msra.mxu0 0.0
    %899 = vmatprep.subr.mxu0 0.0
    %900 = vmatpush1.msra.mxu0 0.0
    %901 = vmatprep.subr.mxu0 0.0
    %902 = vmatpush1.msra.mxu0 0.0
    %903 = vmatprep.subr.mxu0 0.0
    %904 = vmatpush1.msra.mxu0 0.0
    %905 = vmatprep.subr.mxu0 0.0
    %906 = vmatpush1.msra.mxu0 0.0
    %907 = vmatprep.subr.mxu0 0.0
    %908 = vmatpush1.msra.mxu0 0.0
    %909 = vmatprep.subr.mxu0 0.0
    %910 = vmatpush1.msra.mxu0 0.0
    %911 = vmatprep.subr.mxu0 0.0
    %912 = vmatpush1.msra.mxu0 0.0
    %913 = vmatprep.subr.mxu0 0.0
    %914 = vmatpush1.msra.mxu0 0.0
    %915 = vmatprep.subr.mxu0 0.0
    %916 = vmatpush1.msra.mxu0 0.0
    %917 = vmatprep.subr.mxu0 0.0
    %918 = vmatpush1.msra.mxu0 0.0
    %919 = vmatprep.subr.mxu0 0.0
    %920 = vmatpush1.msra.mxu0 0.0
    %921 = vmatprep.mubr.f32.mxu0 0.0
    %922 = vmatmul.mubr.f32.gmra.mrb[0].mxu0 %v855
    %v923 = vpop.f32.mrb[0].mxu0
    %v924 = vadd.f32 0.0, %v923
    %v925 = vpop.f32.mrb[0].mxu0
    %926 = vdwg.mxu0
    %928 = vrot.lane.b32.xlu0 %v592, 8
    %v929 = vpop.permute.xlu0 %928
    %932 = vrot.lane.b32.xlu0 %v758, 16
    %v933 = vpop.permute.xlu0 %932
    %936 = vrot.lane.b32.xlu0 %v924, 24
    %v937 = vpop.permute.xlu0 %936
    %v939 = vsel %vm266, %v426, %v929
    %vm940 = vcmask 130048
    %v941 = vsel %vm940, %v939, %v933
    %vm942 = vcmask 195584
    %v943 = vsel %vm942, %v941, %v937
    %v944 = vlaneseq
    %v945 = vshrl.u32 %v944, 7
    %v946 = vsub.s32 1, %v945
    %v947 = vrot.slane %v172, %v946
    %949 = vrot.lane.b32.xlu0 %v256, 96
    %v950 = vpop.permute.xlu0 %949
    %v951 = vsel %vm266, %v256, 0
    %v953 = vsel %vm266, %v950, 0
    %955 = vmatprep.subr.mxu0 0.0
    %956 = vmatpush1.xpose.msra.mxu0 %v953
    %957 = vmatprep.subr.mxu0 0.0
    %958 = vmatpush1.xpose.msra.mxu0 0.0
    %959 = vmatprep.subr.mxu0 0.0
    %960 = vmatpush1.xpose.msra.mxu0 0.0
    %961 = vmatprep.subr.mxu0 0.0
    %962 = vmatpush1.xpose.msra.mxu0 0.0
    %963 = vmatprep.subr.mxu0 0.0
    %964 = vmatpush1.xpose.msra.mxu0 0.0
    %965 = vmatprep.subr.mxu0 0.0
    %966 = vmatpush1.xpose.msra.mxu0 0.0
    %967 = vmatprep.subr.mxu0 0.0
    %968 = vmatpush1.xpose.msra.mxu0 0.0
    %969 = vmatprep.subr.mxu0 0.0
    %970 = vmatpush1.xpose.msra.mxu0 0.0
    %971 = vmatprep.subr.mxu0 0.0
    %972 = vmatpush1.xpose.msra.mxu0 0.0
    %973 = vmatprep.subr.mxu0 0.0
    %974 = vmatpush1.xpose.msra.mxu0 0.0
    %975 = vmatprep.subr.mxu0 0.0
    %976 = vmatpush1.xpose.msra.mxu0 0.0
    %977 = vmatprep.subr.mxu0 0.0
    %978 = vmatpush1.xpose.msra.mxu0 0.0
    %979 = vmatprep.subr.mxu0 0.0
    %980 = vmatpush1.xpose.msra.mxu0 0.0
    %981 = vmatprep.subr.mxu0 0.0
    %982 = vmatpush1.xpose.msra.mxu0 0.0
    %983 = vmatprep.subr.mxu0 0.0
    %984 = vmatpush1.xpose.msra.mxu0 0.0
    %985 = vmatprep.subr.mxu0 0.0
    %986 = vmatpush1.xpose.msra.mxu0 0.0
    %987 = vmatprep.subr.mxu0 0.0
    %988 = vmatpush1.xpose.msra.mxu0 0.0
    %989 = vmatprep.subr.mxu0 0.0
    %990 = vmatpush1.xpose.msra.mxu0 0.0
    %991 = vmatprep.subr.mxu0 0.0
    %992 = vmatpush1.xpose.msra.mxu0 0.0
    %993 = vmatprep.subr.mxu0 0.0
    %994 = vmatpush1.xpose.msra.mxu0 0.0
    %995 = vmatprep.subr.mxu0 0.0
    %996 = vmatpush1.xpose.msra.mxu0 0.0
    %997 = vmatprep.subr.mxu0 0.0
    %998 = vmatpush1.xpose.msra.mxu0 0.0
    %999 = vmatprep.subr.mxu0 0.0
    %1000 = vmatpush1.xpose.msra.mxu0 0.0
    %1001 = vmatprep.subr.mxu0 0.0
    %1002 = vmatpush1.xpose.msra.mxu0 0.0
    %1003 = vmatprep.subr.mxu0 0.0
    %1004 = vmatpush1.xpose.msra.mxu0 0.0
    %1005 = vmatprep.subr.mxu0 0.0
    %1006 = vmatpush1.xpose.msra.mxu0 0.0
    %1007 = vmatprep.subr.mxu0 0.0
    %1008 = vmatpush1.xpose.msra.mxu0 0.0
    %1009 = vmatprep.subr.mxu0 0.0
    %1010 = vmatpush1.xpose.msra.mxu0 0.0
    %1011 = vmatprep.subr.mxu0 0.0
    %1012 = vmatpush1.xpose.msra.mxu0 0.0
    %1013 = vmatprep.subr.mxu0 0.0
    %1014 = vmatpush1.xpose.msra.mxu0 0.0
    %1015 = vmatprep.subr.mxu0 0.0
    %1016 = vmatpush1.xpose.msra.mxu0 0.0
    %1017 = vmatprep.subr.mxu0 0.0
    %1018 = vmatpush1.xpose.msra.mxu0 0.0
    %1019 = vmatprep.mubr.f32.mxu0 0.0
    %1020 = vmatmul.mubr.f32.gmra.mrb[0].mxu0 %v951
    %v1021 = vpop.f32.mrb[0].mxu0
    %v1022 = vadd.f32 %v947, %v1021
    %v1023 = vpop.f32.mrb[0].mxu0
    %1024 = vdwg.mxu0
    %v1025 = vmul.f32 %v1022, 0.17677669
    %v1026 = vsel %vm266, %v1025, -inf
    %1027 = vmax.xlane.f32.xlu0 %v1026
    %v1028 = vpop.xlane.xlu0 %1027
    %v1029 = vsub.f32 %v1025, %v1028
    %v1030 = vmul.f32 %v1029, 1.442695
    %v1031 = vpow.pop %v1030
    %v1032 = vsel %vm266, %v1031, 0.0
    %1033 = vadd.xlane.f32.xlu0 %v1032
    %v1034 = vpop.xlane.xlu0 %1033
    %v1035 = vrcp.pop %v1034
    %v1036 = vmul.f32 %v1031, %v1035
    %1037 = vrot.lane.b32.xlu0 %v256, 64
    %v1038 = vpop.permute.xlu0 %1037
    %v1041 = vsel %vm266, %v1036, 0
    %1043 = vmatprep.subr.mxu0 0.0
    %1044 = vmatpush1.msra.mxu0 %v1038
    %1045 = vmatprep.subr.mxu0 0.0
    %1046 = vmatpush1.msra.mxu0 0.0
    %1047 = vmatprep.subr.mxu0 0.0
    %1048 = vmatpush1.msra.mxu0 0.0
    %1049 = vmatprep.subr.mxu0 0.0
    %1050 = vmatpush1.msra.mxu0 0.0
    %1051 = vmatprep.subr.mxu0 0.0
    %1052 = vmatpush1.msra.mxu0 0.0
    %1053 = vmatprep.subr.mxu0 0.0
    %1054 = vmatpush1.msra.mxu0 0.0
    %1055 = vmatprep.subr.mxu0 0.0
    %1056 = vmatpush1.msra.mxu0 0.0
    %1057 = vmatprep.subr.mxu0 0.0
    %1058 = vmatpush1.msra.mxu0 0.0
    %1059 = vmatprep.subr.mxu0 0.0
    %1060 = vmatpush1.msra.mxu0 0.0
    %1061 = vmatprep.subr.mxu0 0.0
    %1062 = vmatpush1.msra.mxu0 0.0
    %1063 = vmatprep.subr.mxu0 0.0
    %1064 = vmatpush1.msra.mxu0 0.0
    %1065 = vmatprep.subr.mxu0 0.0
    %1066 = vmatpush1.msra.mxu0 0.0
    %1067 = vmatprep.subr.mxu0 0.0
    %1068 = vmatpush1.msra.mxu0 0.0
    %1069 = vmatprep.subr.mxu0 0.0
    %1070 = vmatpush1.msra.mxu0 0.0
    %1071 = vmatprep.subr.mxu0 0.0
    %1072 = vmatpush1.msra.mxu0 0.0
    %1073 = vmatprep.subr.mxu0 0.0
    %1074 = vmatpush1.msra.mxu0 0.0
    %1075 = vmatprep.subr.mxu0 0.0
    %1076 = vmatpush1.msra.mxu0 0.0
    %1077 = vmatprep.subr.mxu0 0.0
    %1078 = vmatpush1.msra.mxu0 0.0
    %1079 = vmatprep.subr.mxu0 0.0
    %1080 = vmatpush1.msra.mxu0 0.0
    %1081 = vmatprep.subr.mxu0 0.0
    %1082 = vmatpush1.msra.mxu0 0.0
    %1083 = vmatprep.subr.mxu0 0.0
    %1084 = vmatpush1.msra.mxu0 0.0
    %1085 = vmatprep.subr.mxu0 0.0
    %1086 = vmatpush1.msra.mxu0 0.0
    %1087 = vmatprep.subr.mxu0 0.0
    %1088 = vmatpush1.msra.mxu0 0.0
    %1089 = vmatprep.subr.mxu0 0.0
    %1090 = vmatpush1.msra.mxu0 0.0
    %1091 = vmatprep.subr.mxu0 0.0
    %1092 = vmatpush1.msra.mxu0 0.0
    %1093 = vmatprep.subr.mxu0 0.0
    %1094 = vmatpush1.msra.mxu0 0.0
    %1095 = vmatprep.subr.mxu0 0.0
    %1096 = vmatpush1.msra.mxu0 0.0
    %1097 = vmatprep.subr.mxu0 0.0
    %1098 = vmatpush1.msra.mxu0 0.0
    %1099 = vmatprep.subr.mxu0 0.0
    %1100 = vmatpush1.msra.mxu0 0.0
    %1101 = vmatprep.subr.mxu0 0.0
    %1102 = vmatpush1.msra.mxu0 0.0
    %1103 = vmatprep.subr.mxu0 0.0
    %1104 = vmatpush1.msra.mxu0 0.0
    %1105 = vmatprep.subr.mxu0 0.0
    %1106 = vmatpush1.msra.mxu0 0.0
    %1107 = vmatprep.mubr.f32.mxu0 0.0
    %1108 = vmatmul.mubr.f32.gmra.mrb[0].mxu0 %v1041
    %v1109 = vpop.f32.mrb[0].mxu0
    %v1110 = vadd.f32 0.0, %v1109
    %v1111 = vpop.f32.mrb[0].mxu0
    %1112 = vdwg.mxu0
    %1113 = vrot.lane.b32.xlu0 %v256, 120
    %v1114 = vpop.permute.xlu0 %1113
    %1115 = vrot.lane.b32.xlu0 %v256, 88
    %v1116 = vpop.permute.xlu0 %1115
    %v1117 = vsel %vm266, %v1114, 0
    %v1119 = vsel %vm266, %v1116, 0
    %1121 = vmatprep.subr.mxu0 0.0
    %1122 = vmatpush1.xpose.msra.mxu0 %v1119
    %1123 = vmatprep.subr.mxu0 0.0
    %1124 = vmatpush1.xpose.msra.mxu0 0.0
    %1125 = vmatprep.subr.mxu0 0.0
    %1126 = vmatpush1.xpose.msra.mxu0 0.0
    %1127 = vmatprep.subr.mxu0 0.0
    %1128 = vmatpush1.xpose.msra.mxu0 0.0
    %1129 = vmatprep.subr.mxu0 0.0
    %1130 = vmatpush1.xpose.msra.mxu0 0.0
    %1131 = vmatprep.subr.mxu0 0.0
    %1132 = vmatpush1.xpose.msra.mxu0 0.0
    %1133 = vmatprep.subr.mxu0 0.0
    %1134 = vmatpush1.xpose.msra.mxu0 0.0
    %1135 = vmatprep.subr.mxu0 0.0
    %1136 = vmatpush1.xpose.msra.mxu0 0.0
    %1137 = vmatprep.subr.mxu0 0.0
    %1138 = vmatpush1.xpose.msra.mxu0 0.0
    %1139 = vmatprep.subr.mxu0 0.0
    %1140 = vmatpush1.xpose.msra.mxu0 0.0
    %1141 = vmatprep.subr.mxu0 0.0
    %1142 = vmatpush1.xpose.msra.mxu0 0.0
    %1143 = vmatprep.subr.mxu0 0.0
    %1144 = vmatpush1.xpose.msra.mxu0 0.0
    %1145 = vmatprep.subr.mxu0 0.0
    %1146 = vmatpush1.xpose.msra.mxu0 0.0
    %1147 = vmatprep.subr.mxu0 0.0
    %1148 = vmatpush1.xpose.msra.mxu0 0.0
    %1149 = vmatprep.subr.mxu0 0.0
    %1150 = vmatpush1.xpose.msra.mxu0 0.0
    %1151 = vmatprep.subr.mxu0 0.0
    %1152 = vmatpush1.xpose.msra.mxu0 0.0
    %1153 = vmatprep.subr.mxu0 0.0
    %1154 = vmatpush1.xpose.msra.mxu0 0.0
    %1155 = vmatprep.subr.mxu0 0.0
    %1156 = vmatpush1.xpose.msra.mxu0 0.0
    %1157 = vmatprep.subr.mxu0 0.0
    %1158 = vmatpush1.xpose.msra.mxu0 0.0
    %1159 = vmatprep.subr.mxu0 0.0
    %1160 = vmatpush1.xpose.msra.mxu0 0.0
    %1161 = vmatprep.subr.mxu0 0.0
    %1162 = vmatpush1.xpose.msra.mxu0 0.0
    %1163 = vmatprep.subr.mxu0 0.0
    %1164 = vmatpush1.xpose.msra.mxu0 0.0
    %1165 = vmatprep.subr.mxu0 0.0
    %1166 = vmatpush1.xpose.msra.mxu0 0.0
    %1167 = vmatprep.subr.mxu0 0.0
    %1168 = vmatpush1.xpose.msra.mxu0 0.0
    %1169 = vmatprep.subr.mxu0 0.0
    %1170 = vmatpush1.xpose.msra.mxu0 0.0
    %1171 = vmatprep.subr.mxu0 0.0
    %1172 = vmatpush1.xpose.msra.mxu0 0.0
    %1173 = vmatprep.subr.mxu0 0.0
    %1174 = vmatpush1.xpose.msra.mxu0 0.0
    %1175 = vmatprep.subr.mxu0 0.0
    %1176 = vmatpush1.xpose.msra.mxu0 0.0
    %1177 = vmatprep.subr.mxu0 0.0
    %1178 = vmatpush1.xpose.msra.mxu0 0.0
    %1179 = vmatprep.subr.mxu0 0.0
    %1180 = vmatpush1.xpose.msra.mxu0 0.0
    %1181 = vmatprep.subr.mxu0 0.0
    %1182 = vmatpush1.xpose.msra.mxu0 0.0
    %1183 = vmatprep.subr.mxu0 0.0
    %1184 = vmatpush1.xpose.msra.mxu0 0.0
    %1185 = vmatprep.mubr.f32.mxu0 0.0
    %1186 = vmatmul.mubr.f32.gmra.mrb[0].mxu0 %v1117
    %v1187 = vpop.f32.mrb[0].mxu0
    %v1188 = vadd.f32 %v947, %v1187
    %v1189 = vpop.f32.mrb[0].mxu0
    %1190 = vdwg.mxu0
    %v1191 = vmul.f32 %v1188, 0.17677669
    %v1192 = vsel %vm266, %v1191, -inf
    %1193 = vmax.xlane.f32.xlu0 %v1192
    %v1194 = vpop.xlane.xlu0 %1193
    %v1195 = vsub.f32 %v1191, %v1194
    %v1196 = vmul.f32 %v1195, 1.442695
    %v1197 = vpow.pop %v1196
    %v1198 = vsel %vm266, %v1197, 0.0
    %1199 = vadd.xlane.f32.xlu0 %v1198
    %v1200 = vpop.xlane.xlu0 %1199
    %v1201 = vrcp.pop %v1200
    %v1202 = vmul.f32 %v1197, %v1201
    %1203 = vrot.lane.b32.xlu0 %v256, 56
    %v1204 = vpop.permute.xlu0 %1203
    %v1207 = vsel %vm266, %v1202, 0
    %1209 = vmatprep.subr.mxu0 0.0
    %1210 = vmatpush1.msra.mxu0 %v1204
    %1211 = vmatprep.subr.mxu0 0.0
    %1212 = vmatpush1.msra.mxu0 0.0
    %1213 = vmatprep.subr.mxu0 0.0
    %1214 = vmatpush1.msra.mxu0 0.0
    %1215 = vmatprep.subr.mxu0 0.0
    %1216 = vmatpush1.msra.mxu0 0.0
    %1217 = vmatprep.subr.mxu0 0.0
    %1218 = vmatpush1.msra.mxu0 0.0
    %1219 = vmatprep.subr.mxu0 0.0
    %1220 = vmatpush1.msra.mxu0 0.0
    %1221 = vmatprep.subr.mxu0 0.0
    %1222 = vmatpush1.msra.mxu0 0.0
    %1223 = vmatprep.subr.mxu0 0.0
    %1224 = vmatpush1.msra.mxu0 0.0
    %1225 = vmatprep.subr.mxu0 0.0
    %1226 = vmatpush1.msra.mxu0 0.0
    %1227 = vmatprep.subr.mxu0 0.0
    %1228 = vmatpush1.msra.mxu0 0.0
    %1229 = vmatprep.subr.mxu0 0.0
    %1230 = vmatpush1.msra.mxu0 0.0
    %1231 = vmatprep.subr.mxu0 0.0
    %1232 = vmatpush1.msra.mxu0 0.0
    %1233 = vmatprep.subr.mxu0 0.0
    %1234 = vmatpush1.msra.mxu0 0.0
    %1235 = vmatprep.subr.mxu0 0.0
    %1236 = vmatpush1.msra.mxu0 0.0
    %1237 = vmatprep.subr.mxu0 0.0
    %1238 = vmatpush1.msra.mxu0 0.0
    %1239 = vmatprep.subr.mxu0 0.0
    %1240 = vmatpush1.msra.mxu0 0.0
    %1241 = vmatprep.subr.mxu0 0.0
    %1242 = vmatpush1.msra.mxu0 0.0
    %1243 = vmatprep.subr.mxu0 0.0
    %1244 = vmatpush1.msra.mxu0 0.0
    %1245 = vmatprep.subr.mxu0 0.0
    %1246 = vmatpush1.msra.mxu0 0.0
    %1247 = vmatprep.subr.mxu0 0.0
    %1248 = vmatpush1.msra.mxu0 0.0
    %1249 = vmatprep.subr.mxu0 0.0
    %1250 = vmatpush1.msra.mxu0 0.0
    %1251 = vmatprep.subr.mxu0 0.0
    %1252 = vmatpush1.msra.mxu0 0.0
    %1253 = vmatprep.subr.mxu0 0.0
    %1254 = vmatpush1.msra.mxu0 0.0
    %1255 = vmatprep.subr.mxu0 0.0
    %1256 = vmatpush1.msra.mxu0 0.0
    %1257 = vmatprep.subr.mxu0 0.0
    %1258 = vmatpush1.msra.mxu0 0.0
    %1259 = vmatprep.subr.mxu0 0.0
    %1260 = vmatpush1.msra.mxu0 0.0
    %1261 = vmatprep.subr.mxu0 0.0
    %1262 = vmatpush1.msra.mxu0 0.0
    %1263 = vmatprep.subr.mxu0 0.0
    %1264 = vmatpush1.msra.mxu0 0.0
    %1265 = vmatprep.subr.mxu0 0.0
    %1266 = vmatpush1.msra.mxu0 0.0
    %1267 = vmatprep.subr.mxu0 0.0
    %1268 = vmatpush1.msra.mxu0 0.0
    %1269 = vmatprep.subr.mxu0 0.0
    %1270 = vmatpush1.msra.mxu0 0.0
    %1271 = vmatprep.subr.mxu0 0.0
    %1272 = vmatpush1.msra.mxu0 0.0
    %1273 = vmatprep.mubr.f32.mxu0 0.0
    %1274 = vmatmul.mubr.f32.gmra.mrb[0].mxu0 %v1207
    %v1275 = vpop.f32.mrb[0].mxu0
    %v1276 = vadd.f32 0.0, %v1275
    %v1277 = vpop.f32.mrb[0].mxu0
    %1278 = vdwg.mxu0
    %1279 = vrot.lane.b32.xlu0 %v256, 112
    %v1280 = vpop.permute.xlu0 %1279
    %1281 = vrot.lane.b32.xlu0 %v256, 80
    %v1282 = vpop.permute.xlu0 %1281
    %v1283 = vsel %vm266, %v1280, 0
    %v1285 = vsel %vm266, %v1282, 0
    %1287 = vmatprep.subr.mxu0 0.0
    %1288 = vmatpush1.xpose.msra.mxu0 %v1285
    %1289 = vmatprep.subr.mxu0 0.0
    %1290 = vmatpush1.xpose.msra.mxu0 0.0
    %1291 = vmatprep.subr.mxu0 0.0
    %1292 = vmatpush1.xpose.msra.mxu0 0.0
    %1293 = vmatprep.subr.mxu0 0.0
    %1294 = vmatpush1.xpose.msra.mxu0 0.0
    %1295 = vmatprep.subr.mxu0 0.0
    %1296 = vmatpush1.xpose.msra.mxu0 0.0
    %1297 = vmatprep.subr.mxu0 0.0
    %1298 = vmatpush1.xpose.msra.mxu0 0.0
    %1299 = vmatprep.subr.mxu0 0.0
    %1300 = vmatpush1.xpose.msra.mxu0 0.0
    %1301 = vmatprep.subr.mxu0 0.0
    %1302 = vmatpush1.xpose.msra.mxu0 0.0
    %1303 = vmatprep.subr.mxu0 0.0
    %1304 = vmatpush1.xpose.msra.mxu0 0.0
    %1305 = vmatprep.subr.mxu0 0.0
    %1306 = vmatpush1.xpose.msra.mxu0 0.0
    %1307 = vmatprep.subr.mxu0 0.0
    %1308 = vmatpush1.xpose.msra.mxu0 0.0
    %1309 = vmatprep.subr.mxu0 0.0
    %1310 = vmatpush1.xpose.msra.mxu0 0.0
    %1311 = vmatprep.subr.mxu0 0.0
    %1312 = vmatpush1.xpose.msra.mxu0 0.0
    %1313 = vmatprep.subr.mxu0 0.0
    %1314 = vmatpush1.xpose.msra.mxu0 0.0
    %1315 = vmatprep.subr.mxu0 0.0
    %1316 = vmatpush1.xpose.msra.mxu0 0.0
    %1317 = vmatprep.subr.mxu0 0.0
    %1318 = vmatpush1.xpose.msra.mxu0 0.0
    %1319 = vmatprep.subr.mxu0 0.0
    %1320 = vmatpush1.xpose.msra.mxu0 0.0
    %1321 = vmatprep.subr.mxu0 0.0
    %1322 = vmatpush1.xpose.msra.mxu0 0.0
    %1323 = vmatprep.subr.mxu0 0.0
    %1324 = vmatpush1.xpose.msra.mxu0 0.0
    %1325 = vmatprep.subr.mxu0 0.0
    %1326 = vmatpush1.xpose.msra.mxu0 0.0
    %1327 = vmatprep.subr.mxu0 0.0
    %1328 = vmatpush1.xpose.msra.mxu0 0.0
    %1329 = vmatprep.subr.mxu0 0.0
    %1330 = vmatpush1.xpose.msra.mxu0 0.0
    %1331 = vmatprep.subr.mxu0 0.0
    %1332 = vmatpush1.xpose.msra.mxu0 0.0
    %1333 = vmatprep.subr.mxu0 0.0
    %1334 = vmatpush1.xpose.msra.mxu0 0.0
    %1335 = vmatprep.subr.mxu0 0.0
    %1336 = vmatpush1.xpose.msra.mxu0 0.0
    %1337 = vmatprep.subr.mxu0 0.0
    %1338 = vmatpush1.xpose.msra.mxu0 0.0
    %1339 = vmatprep.subr.mxu0 0.0
    %1340 = vmatpush1.xpose.msra.mxu0 0.0
    %1341 = vmatprep.subr.mxu0 0.0
    %1342 = vmatpush1.xpose.msra.mxu0 0.0
    %1343 = vmatprep.subr.mxu0 0.0
    %1344 = vmatpush1.xpose.msra.mxu0 0.0
    %1345 = vmatprep.subr.mxu0 0.0
    %1346 = vmatpush1.xpose.msra.mxu0 0.0
    %1347 = vmatprep.subr.mxu0 0.0
    %1348 = vmatpush1.xpose.msra.mxu0 0.0
    %1349 = vmatprep.subr.mxu0 0.0
    %1350 = vmatpush1.xpose.msra.mxu0 0.0
    %1351 = vmatprep.mubr.f32.mxu0 0.0
    %1352 = vmatmul.mubr.f32.gmra.mrb[0].mxu0 %v1283
    %v1353 = vpop.f32.mrb[0].mxu0
    %v1354 = vadd.f32 %v947, %v1353
    %v1355 = vpop.f32.mrb[0].mxu0
    %1356 = vdwg.mxu0
    %v1357 = vmul.f32 %v1354, 0.17677669
    %v1358 = vsel %vm266, %v1357, -inf
    %1359 = vmax.xlane.f32.xlu0 %v1358
    %v1360 = vpop.xlane.xlu0 %1359
    %v1361 = vsub.f32 %v1357, %v1360
    %v1362 = vmul.f32 %v1361, 1.442695
    %v1363 = vpow.pop %v1362
    %v1364 = vsel %vm266, %v1363, 0.0
    %1365 = vadd.xlane.f32.xlu0 %v1364
    %v1366 = vpop.xlane.xlu0 %1365
    %v1367 = vrcp.pop %v1366
    %v1368 = vmul.f32 %v1363, %v1367
    %1369 = vrot.lane.b32.xlu0 %v256, 48
    %v1370 = vpop.permute.xlu0 %1369
    %v1373 = vsel %vm266, %v1368, 0
    %1375 = vmatprep.subr.mxu0 0.0
    %1376 = vmatpush1.msra.mxu0 %v1370
    %1377 = vmatprep.subr.mxu0 0.0
    %1378 = vmatpush1.msra.mxu0 0.0
    %1379 = vmatprep.subr.mxu0 0.0
    %1380 = vmatpush1.msra.mxu0 0.0
    %1381 = vmatprep.subr.mxu0 0.0
    %1382 = vmatpush1.msra.mxu0 0.0
    %1383 = vmatprep.subr.mxu0 0.0
    %1384 = vmatpush1.msra.mxu0 0.0
    %1385 = vmatprep.subr.mxu0 0.0
    %1386 = vmatpush1.msra.mxu0 0.0
    %1387 = vmatprep.subr.mxu0 0.0
    %1388 = vmatpush1.msra.mxu0 0.0
    %1389 = vmatprep.subr.mxu0 0.0
    %1390 = vmatpush1.msra.mxu0 0.0
    %1391 = vmatprep.subr.mxu0 0.0
    %1392 = vmatpush1.msra.mxu0 0.0
    %1393 = vmatprep.subr.mxu0 0.0
    %1394 = vmatpush1.msra.mxu0 0.0
    %1395 = vmatprep.subr.mxu0 0.0
    %1396 = vmatpush1.msra.mxu0 0.0
    %1397 = vmatprep.subr.mxu0 0.0
    %1398 = vmatpush1.msra.mxu0 0.0
    %1399 = vmatprep.subr.mxu0 0.0
    %1400 = vmatpush1.msra.mxu0 0.0
    %1401 = vmatprep.subr.mxu0 0.0
    %1402 = vmatpush1.msra.mxu0 0.0
    %1403 = vmatprep.subr.mxu0 0.0
    %1404 = vmatpush1.msra.mxu0 0.0
    %1405 = vmatprep.subr.mxu0 0.0
    %1406 = vmatpush1.msra.mxu0 0.0
    %1407 = vmatprep.subr.mxu0 0.0
    %1408 = vmatpush1.msra.mxu0 0.0
    %1409 = vmatprep.subr.mxu0 0.0
    %1410 = vmatpush1.msra.mxu0 0.0
    %1411 = vmatprep.subr.mxu0 0.0
    %1412 = vmatpush1.msra.mxu0 0.0
    %1413 = vmatprep.subr.mxu0 0.0
    %1414 = vmatpush1.msra.mxu0 0.0
    %1415 = vmatprep.subr.mxu0 0.0
    %1416 = vmatpush1.msra.mxu0 0.0
    %1417 = vmatprep.subr.mxu0 0.0
    %1418 = vmatpush1.msra.mxu0 0.0
    %1419 = vmatprep.subr.mxu0 0.0
    %1420 = vmatpush1.msra.mxu0 0.0
    %1421 = vmatprep.subr.mxu0 0.0
    %1422 = vmatpush1.msra.mxu0 0.0
    %1423 = vmatprep.subr.mxu0 0.0
    %1424 = vmatpush1.msra.mxu0 0.0
    %1425 = vmatprep.subr.mxu0 0.0
    %1426 = vmatpush1.msra.mxu0 0.0
    %1427 = vmatprep.subr.mxu0 0.0
    %1428 = vmatpush1.msra.mxu0 0.0
    %1429 = vmatprep.subr.mxu0 0.0
    %1430 = vmatpush1.msra.mxu0 0.0
    %1431 = vmatprep.subr.mxu0 0.0
    %1432 = vmatpush1.msra.mxu0 0.0
    %1433 = vmatprep.subr.mxu0 0.0
    %1434 = vmatpush1.msra.mxu0 0.0
    %1435 = vmatprep.subr.mxu0 0.0
    %1436 = vmatpush1.msra.mxu0 0.0
    %1437 = vmatprep.subr.mxu0 0.0
    %1438 = vmatpush1.msra.mxu0 0.0
    %1439 = vmatprep.mubr.f32.mxu0 0.0
    %1440 = vmatmul.mubr.f32.gmra.mrb[0].mxu0 %v1373
    %v1441 = vpop.f32.mrb[0].mxu0
    %v1442 = vadd.f32 0.0, %v1441
    %v1443 = vpop.f32.mrb[0].mxu0
    %1444 = vdwg.mxu0
    %1445 = vrot.lane.b32.xlu0 %v256, 104
    %v1446 = vpop.permute.xlu0 %1445
    %1447 = vrot.lane.b32.xlu0 %v256, 72
    %v1448 = vpop.permute.xlu0 %1447
    %v1449 = vsel %vm266, %v1446, 0
    %v1451 = vsel %vm266, %v1448, 0
    %1453 = vmatprep.subr.mxu0 0.0
    %1454 = vmatpush1.xpose.msra.mxu0 %v1451
    %1455 = vmatprep.subr.mxu0 0.0
    %1456 = vmatpush1.xpose.msra.mxu0 0.0
    %1457 = vmatprep.subr.mxu0 0.0
    %1458 = vmatpush1.xpose.msra.mxu0 0.0
    %1459 = vmatprep.subr.mxu0 0.0
    %1460 = vmatpush1.xpose.msra.mxu0 0.0
    %1461 = vmatprep.subr.mxu0 0.0
    %1462 = vmatpush1.xpose.msra.mxu0 0.0
    %1463 = vmatprep.subr.mxu0 0.0
    %1464 = vmatpush1.xpose.msra.mxu0 0.0
    %1465 = vmatprep.subr.mxu0 0.0
    %1466 = vmatpush1.xpose.msra.mxu0 0.0
    %1467 = vmatprep.subr.mxu0 0.0
    %1468 = vmatpush1.xpose.msra.mxu0 0.0
    %1469 = vmatprep.subr.mxu0 0.0
    %1470 = vmatpush1.xpose.msra.mxu0 0.0
    %1471 = vmatprep.subr.mxu0 0.0
    %1472 = vmatpush1.xpose.msra.mxu0 0.0
    %1473 = vmatprep.subr.mxu0 0.0
    %1474 = vmatpush1.xpose.msra.mxu0 0.0
    %1475 = vmatprep.subr.mxu0 0.0
    %1476 = vmatpush1.xpose.msra.mxu0 0.0
    %1477 = vmatprep.subr.mxu0 0.0
    %1478 = vmatpush1.xpose.msra.mxu0 0.0
    %1479 = vmatprep.subr.mxu0 0.0
    %1480 = vmatpush1.xpose.msra.mxu0 0.0
    %1481 = vmatprep.subr.mxu0 0.0
    %1482 = vmatpush1.xpose.msra.mxu0 0.0
    %1483 = vmatprep.subr.mxu0 0.0
    %1484 = vmatpush1.xpose.msra.mxu0 0.0
    %1485 = vmatprep.subr.mxu0 0.0
    %1486 = vmatpush1.xpose.msra.mxu0 0.0
    %1487 = vmatprep.subr.mxu0 0.0
    %1488 = vmatpush1.xpose.msra.mxu0 0.0
    %1489 = vmatprep.subr.mxu0 0.0
    %1490 = vmatpush1.xpose.msra.mxu0 0.0
    %1491 = vmatprep.subr.mxu0 0.0
    %1492 = vmatpush1.xpose.msra.mxu0 0.0
    %1493 = vmatprep.subr.mxu0 0.0
    %1494 = vmatpush1.xpose.msra.mxu0 0.0
    %1495 = vmatprep.subr.mxu0 0.0
    %1496 = vmatpush1.xpose.msra.mxu0 0.0
    %1497 = vmatprep.subr.mxu0 0.0
    %1498 = vmatpush1.xpose.msra.mxu0 0.0
    %1499 = vmatprep.subr.mxu0 0.0
    %1500 = vmatpush1.xpose.msra.mxu0 0.0
    %1501 = vmatprep.subr.mxu0 0.0
    %1502 = vmatpush1.xpose.msra.mxu0 0.0
    %1503 = vmatprep.subr.mxu0 0.0
    %1504 = vmatpush1.xpose.msra.mxu0 0.0
    %1505 = vmatprep.subr.mxu0 0.0
    %1506 = vmatpush1.xpose.msra.mxu0 0.0
    %1507 = vmatprep.subr.mxu0 0.0
    %1508 = vmatpush1.xpose.msra.mxu0 0.0
    %1509 = vmatprep.subr.mxu0 0.0
    %1510 = vmatpush1.xpose.msra.mxu0 0.0
    %1511 = vmatprep.subr.mxu0 0.0
    %1512 = vmatpush1.xpose.msra.mxu0 0.0
    %1513 = vmatprep.subr.mxu0 0.0
    %1514 = vmatpush1.xpose.msra.mxu0 0.0
    %1515 = vmatprep.subr.mxu0 0.0
    %1516 = vmatpush1.xpose.msra.mxu0 0.0
    %1517 = vmatprep.mubr.f32.mxu0 0.0
    %1518 = vmatmul.mubr.f32.gmra.mrb[0].mxu0 %v1449
    %v1519 = vpop.f32.mrb[0].mxu0
    %v1520 = vadd.f32 %v947, %v1519
    %v1521 = vpop.f32.mrb[0].mxu0
    %1522 = vdwg.mxu0
    %v1523 = vmul.f32 %v1520, 0.17677669
    %v1524 = vsel %vm266, %v1523, -inf
    %1525 = vmax.xlane.f32.xlu0 %v1524
    %v1526 = vpop.xlane.xlu0 %1525
    %v1527 = vsub.f32 %v1523, %v1526
    %v1528 = vmul.f32 %v1527, 1.442695
    %v1529 = vpow.pop %v1528
    %v1530 = vsel %vm266, %v1529, 0.0
    %1531 = vadd.xlane.f32.xlu0 %v1530
    %v1532 = vpop.xlane.xlu0 %1531
    %v1533 = vrcp.pop %v1532
    %v1534 = vmul.f32 %v1529, %v1533
    %1535 = vrot.lane.b32.xlu0 %v256, 40
    %v1536 = vpop.permute.xlu0 %1535
    %v1539 = vsel %vm266, %v1534, 0
    %1541 = vmatprep.subr.mxu0 0.0
    %1542 = vmatpush1.msra.mxu0 %v1536
    %1543 = vmatprep.subr.mxu0 0.0
    %1544 = vmatpush1.msra.mxu0 0.0
    %1545 = vmatprep.subr.mxu0 0.0
    %1546 = vmatpush1.msra.mxu0 0.0
    %1547 = vmatprep.subr.mxu0 0.0
    %1548 = vmatpush1.msra.mxu0 0.0
    %1549 = vmatprep.subr.mxu0 0.0
    %1550 = vmatpush1.msra.mxu0 0.0
    %1551 = vmatprep.subr.mxu0 0.0
    %1552 = vmatpush1.msra.mxu0 0.0
    %1553 = vmatprep.subr.mxu0 0.0
    %1554 = vmatpush1.msra.mxu0 0.0
    %1555 = vmatprep.subr.mxu0 0.0
    %1556 = vmatpush1.msra.mxu0 0.0
    %1557 = vmatprep.subr.mxu0 0.0
    %1558 = vmatpush1.msra.mxu0 0.0
    %1559 = vmatprep.subr.mxu0 0.0
    %1560 = vmatpush1.msra.mxu0 0.0
    %1561 = vmatprep.subr.mxu0 0.0
    %1562 = vmatpush1.msra.mxu0 0.0
    %1563 = vmatprep.subr.mxu0 0.0
    %1564 = vmatpush1.msra.mxu0 0.0
    %1565 = vmatprep.subr.mxu0 0.0
    %1566 = vmatpush1.msra.mxu0 0.0
    %1567 = vmatprep.subr.mxu0 0.0
    %1568 = vmatpush1.msra.mxu0 0.0
    %1569 = vmatprep.subr.mxu0 0.0
    %1570 = vmatpush1.msra.mxu0 0.0
    %1571 = vmatprep.subr.mxu0 0.0
    %1572 = vmatpush1.msra.mxu0 0.0
    %1573 = vmatprep.subr.mxu0 0.0
    %1574 = vmatpush1.msra.mxu0 0.0
    %1575 = vmatprep.subr.mxu0 0.0
    %1576 = vmatpush1.msra.mxu0 0.0
    %1577 = vmatprep.subr.mxu0 0.0
    %1578 = vmatpush1.msra.mxu0 0.0
    %1579 = vmatprep.subr.mxu0 0.0
    %1580 = vmatpush1.msra.mxu0 0.0
    %1581 = vmatprep.subr.mxu0 0.0
    %1582 = vmatpush1.msra.mxu0 0.0
    %1583 = vmatprep.subr.mxu0 0.0
    %1584 = vmatpush1.msra.mxu0 0.0
    %1585 = vmatprep.subr.mxu0 0.0
    %1586 = vmatpush1.msra.mxu0 0.0
    %1587 = vmatprep.subr.mxu0 0.0
    %1588 = vmatpush1.msra.mxu0 0.0
    %1589 = vmatprep.subr.mxu0 0.0
    %1590 = vmatpush1.msra.mxu0 0.0
    %1591 = vmatprep.subr.mxu0 0.0
    %1592 = vmatpush1.msra.mxu0 0.0
    %1593 = vmatprep.subr.mxu0 0.0
    %1594 = vmatpush1.msra.mxu0 0.0
    %1595 = vmatprep.subr.mxu0 0.0
    %1596 = vmatpush1.msra.mxu0 0.0
    %1597 = vmatprep.subr.mxu0 0.0
    %1598 = vmatpush1.msra.mxu0 0.0
    %1599 = vmatprep.subr.mxu0 0.0
    %1600 = vmatpush1.msra.mxu0 0.0
    %1601 = vmatprep.subr.mxu0 0.0
    %1602 = vmatpush1.msra.mxu0 0.0
    %1603 = vmatprep.subr.mxu0 0.0
    %1604 = vmatpush1.msra.mxu0 0.0
    %1605 = vmatprep.mubr.f32.mxu0 0.0
    %1606 = vmatmul.mubr.f32.gmra.mrb[0].mxu0 %v1539
    %v1607 = vpop.f32.mrb[0].mxu0
    %v1608 = vadd.f32 0.0, %v1607
    %v1609 = vpop.f32.mrb[0].mxu0
    %1610 = vdwg.mxu0
    %1612 = vrot.lane.b32.xlu0 %v1276, 8
    %v1613 = vpop.permute.xlu0 %1612
    %1616 = vrot.lane.b32.xlu0 %v1442, 16
    %v1617 = vpop.permute.xlu0 %1616
    %1620 = vrot.lane.b32.xlu0 %v1608, 24
    %v1621 = vpop.permute.xlu0 %1620
    %v1623 = vsel %vm266, %v1110, %v1613
    %v1624 = vsel %vm940, %v1623, %v1617
    %v1625 = vsel %vm942, %v1624, %v1621
    %v1626 = vld [vmem:[%s5] sm:$0xff]
    %v1627 = vld [vmem:[%s5 + $0x8] sm:$0xff]
    %v1628 = vld [vmem:[%s5 + $0x10] sm:$0xff]
    %v1629 = vld [vmem:[%s5 + $0x18] sm:$0xff]
    %v1630 = vld [vmem:[%s6] sm:$0x1]
    %v1632 = vlaneseq
    %v1633 = vshrl.u32 %v1632, 7
    %v1634 = vsub.s32 0, %v1633
    %v1635 = vrot.slane %v1630, %v1634
    %v1638 = vsel %vm177, %v943, 0
    %v1641 = vsel %vm177, %v1625, 0
    %1643 = vmatprep.subr.mxu0 0.0
    %1644 = vmatpush1.msra.mxu0 %v1626
    %1645 = vmatprep.subr.mxu0 0.0
    %1646 = vmatpush1.msra.mxu0 %v1627
    %1647 = vmatprep.subr.mxu0 0.0
    %1648 = vmatpush1.msra.mxu0 %v1628
    %1649 = vmatprep.subr.mxu0 0.0
    %1650 = vmatpush1.msra.mxu0 %v1629
    %1651 = vmatprep.subr.mxu0 0.0
    %1652 = vmatpush1.msra.mxu0 0.0
    %1653 = vmatprep.subr.mxu0 0.0
    %1654 = vmatpush1.msra.mxu0 0.0
    %1655 = vmatprep.subr.mxu0 0.0
    %1656 = vmatpush1.msra.mxu0 0.0
    %1657 = vmatprep.subr.mxu0 0.0
    %1658 = vmatpush1.msra.mxu0 0.0
    %1659 = vmatprep.subr.mxu0 0.0
    %1660 = vmatpush1.msra.mxu0 0.0
    %1661 = vmatprep.subr.mxu0 0.0
    %1662 = vmatpush1.msra.mxu0 0.0
    %1663 = vmatprep.subr.mxu0 0.0
    %1664 = vmatpush1.msra.mxu0 0.0
    %1665 = vmatprep.subr.mxu0 0.0
    %1666 = vmatpush1.msra.mxu0 0.0
    %1667 = vmatprep.subr.mxu0 0.0
    %1668 = vmatpush1.msra.mxu0 0.0
    %1669 = vmatprep.subr.mxu0 0.0
    %1670 = vmatpush1.msra.mxu0 0.0
    %1671 = vmatprep.subr.mxu0 0.0
    %1672 = vmatpush1.msra.mxu0 0.0
    %1673 = vmatprep.subr.mxu0 0.0
    %1674 = vmatpush1.msra.mxu0 0.0
    %1675 = vmatprep.subr.mxu0 0.0
    %1676 = vmatpush1.msra.mxu0 0.0
    %1677 = vmatprep.subr.mxu0 0.0
    %1678 = vmatpush1.msra.mxu0 0.0
    %1679 = vmatprep.subr.mxu0 0.0
    %1680 = vmatpush1.msra.mxu0 0.0
    %1681 = vmatprep.subr.mxu0 0.0
    %1682 = vmatpush1.msra.mxu0 0.0
    %1683 = vmatprep.subr.mxu0 0.0
    %1684 = vmatpush1.msra.mxu0 0.0
    %1685 = vmatprep.subr.mxu0 0.0
    %1686 = vmatpush1.msra.mxu0 0.0
    %1687 = vmatprep.subr.mxu0 0.0
    %1688 = vmatpush1.msra.mxu0 0.0
    %1689 = vmatprep.subr.mxu0 0.0
    %1690 = vmatpush1.msra.mxu0 0.0
    %1691 = vmatprep.subr.mxu0 0.0
    %1692 = vmatpush1.msra.mxu0 0.0
    %1693 = vmatprep.subr.mxu0 0.0
    %1694 = vmatpush1.msra.mxu0 0.0
    %1695 = vmatprep.subr.mxu0 0.0
    %1696 = vmatpush1.msra.mxu0 0.0
    %1697 = vmatprep.subr.mxu0 0.0
    %1698 = vmatpush1.msra.mxu0 0.0
    %1699 = vmatprep.subr.mxu0 0.0
    %1700 = vmatpush1.msra.mxu0 0.0
    %1701 = vmatprep.subr.mxu0 0.0
    %1702 = vmatpush1.msra.mxu0 0.0
    %1703 = vmatprep.subr.mxu0 0.0
    %1704 = vmatpush1.msra.mxu0 0.0
    %1705 = vmatprep.subr.mxu0 0.0
    %1706 = vmatpush1.msra.mxu0 0.0
    %1707 = vmatprep.mubr.f32.mxu0 0.0
    %1708 = vmatmul.mubr.f32.gmra.mrb[0].mxu0 %v1638
    %v1709 = vpop.f32.mrb[0].mxu0
    %v1710 = vadd.f32 %v1635, %v1709
    %v1711 = vpop.f32.mrb[0].mxu0
    %1712 = vmatprep.mubr.f32.mxu0 0.0
    %1713 = vmatmul.mubr.f32.gmra.mrb[0].mxu0 %v1641
    %v1714 = vpop.f32.mrb[0].mxu0
    %v1715 = vadd.f32 %v1635, %v1714
    %v1716 = vpop.f32.mrb[0].mxu0
    %1717 = vdwg.mxu0
    %v1718 = vadd.f32 %v1710, %v162
    %v1719 = vadd.f32 %v1715, %v167
    %v1720 = vld [vmem:[%s7] sm:$0x1]
    %v1721 = vld [vmem:[%s8] sm:$0x1]
    %v1722 = vsel %vm177, %v1718, 0.0
    %1723 = vadd.xlane.f32.xlu0 %v1722
    %v1724 = vpop.xlane.xlu0 %1723
    %v1725 = vsel %vm177, %v1719, 0.0
    %1726 = vadd.xlane.f32.xlu0 %v1725
    %v1727 = vpop.xlane.xlu0 %1726
    %v1728 = vrcp.pop 32.0
    %v1729 = vmul.f32 %v1724, %v1728
    %v1730 = vmul.f32 %v1727, %v1728
    %v1731 = vsub.f32 %v1718, %v1729
    %v1732 = vsub.f32 %v1719, %v1730
    %v1733 = vmul.f32 %v1731, %v1731
    %v1734 = vmul.f32 %v1732, %v1732
    %v1735 = vsel %vm177, %v1733, 0.0
    %1736 = vadd.xlane.f32.xlu0 %v1735
    %v1737 = vpop.xlane.xlu0 %1736
    %v1738 = vsel %vm177, %v1734, 0.0
    %1739 = vadd.xlane.f32.xlu0 %v1738
    %v1740 = vpop.xlane.xlu0 %1739
    %v1741 = vmul.f32 %v1737, %v1728
    %v1742 = vmul.f32 %v1740, %v1728
    %v1743 = vadd.f32 %v1741, 1e-05
    %v1744 = vadd.f32 %v1742, 1e-05
    %v1745 = vrsqrt.pop %v1743
    %v1746 = vrsqrt.pop %v1744
    %v1747 = vmul.f32 %v1731, %v1745
    %v1748 = vmul.f32 %v1732, %v1746
    %v1750 = vlaneseq
    %v1751 = vshrl.u32 %v1750, 7
    %v1752 = vsub.s32 0, %v1751
    %v1753 = vrot.slane %v1720, %v1752
    %v1755 = vmul.f32 %v1747, %v1753
    %v1756 = vmul.f32 %v1748, %v1753
    %v1758 = vlaneseq
    %v1759 = vshrl.u32 %v1758, 7
    %v1760 = vsub.s32 0, %v1759
    %v1761 = vrot.slane %v1721, %v1760
    %v1763 = vadd.f32 %v1755, %v1761
    %v1764 = vadd.f32 %v1756, %v1761
    %v1765 = vld [vmem:[%s9] sm:$0xff]
    %v1766 = vld [vmem:[%s9 + $0x8] sm:$0xff]
    %v1767 = vld [vmem:[%s9 + $0x10] sm:$0xff]
    %v1768 = vld [vmem:[%s9 + $0x18] sm:$0xff]
    %v1769 = vld [vmem:[%s10] sm:$0x1]
    %v1771 = vlaneseq
    %v1772 = vshrl.u32 %v1771, 7
    %v1773 = vsub.s32 0, %v1772
    %v1774 = vrot.slane %v1769, %v1773
    %v1777 = vsel %vm177, %v1763, 0
    %v1780 = vsel %vm177, %v1764, 0
    %1782 = vmatprep.subr.mxu0 0.0
    %1783 = vmatpush1.msra.mxu0 %v1765
    %1784 = vmatprep.subr.mxu0 0.0
    %1785 = vmatpush1.msra.mxu0 %v1766
    %1786 = vmatprep.subr.mxu0 0.0
    %1787 = vmatpush1.msra.mxu0 %v1767
    %1788 = vmatprep.subr.mxu0 0.0
    %1789 = vmatpush1.msra.mxu0 %v1768
    %1790 = vmatprep.subr.mxu0 0.0
    %1791 = vmatpush1.msra.mxu0 0.0
    %1792 = vmatprep.subr.mxu0 0.0
    %1793 = vmatpush1.msra.mxu0 0.0
    %1794 = vmatprep.subr.mxu0 0.0
    %1795 = vmatpush1.msra.mxu0 0.0
    %1796 = vmatprep.subr.mxu0 0.0
    %1797 = vmatpush1.msra.mxu0 0.0
    %1798 = vmatprep.subr.mxu0 0.0
    %1799 = vmatpush1.msra.mxu0 0.0
    %1800 = vmatprep.subr.mxu0 0.0
    %1801 = vmatpush1.msra.mxu0 0.0
    %1802 = vmatprep.subr.mxu0 0.0
    %1803 = vmatpush1.msra.mxu0 0.0
    %1804 = vmatprep.subr.mxu0 0.0
    %1805 = vmatpush1.msra.mxu0 0.0
    %1806 = vmatprep.subr.mxu0 0.0
    %1807 = vmatpush1.msra.mxu0 0.0
    %1808 = vmatprep.subr.mxu0 0.0
    %1809 = vmatpush1.msra.mxu0 0.0
    %1810 = vmatprep.subr.mxu0 0.0
    %1811 = vmatpush1.msra.mxu0 0.0
    %1812 = vmatprep.subr.mxu0 0.0
    %1813 = vmatpush1.msra.mxu0 0.0
    %1814 = vmatprep.subr.mxu0 0.0
    %1815 = vmatpush1.msra.mxu0 0.0
    %1816 = vmatprep.subr.mxu0 0.0
    %1817 = vmatpush1.msra.mxu0 0.0
    %1818 = vmatprep.subr.mxu0 0.0
    %1819 = vmatpush1.msra.mxu0 0.0
    %1820 = vmatprep.subr.mxu0 0.0
    %1821 = vmatpush1.msra.mxu0 0.0
    %1822 = vmatprep.subr.mxu0 0.0
    %1823 = vmatpush1.msra.mxu0 0.0
    %1824 = vmatprep.subr.mxu0 0.0
    %1825 = vmatpush1.msra.mxu0 0.0
    %1826 = vmatprep.subr.mxu0 0.0
    %1827 = vmatpush1.msra.mxu0 0.0
    %1828 = vmatprep.subr.mxu0 0.0
    %1829 = vmatpush1.msra.mxu0 0.0
    %1830 = vmatprep.subr.mxu0 0.0
    %1831 = vmatpush1.msra.mxu0 0.0
    %1832 = vmatprep.subr.mxu0 0.0
    %1833 = vmatpush1.msra.mxu0 0.0
    %1834 = vmatprep.subr.mxu0 0.0
    %1835 = vmatpush1.msra.mxu0 0.0
    %1836 = vmatprep.subr.mxu0 0.0
    %1837 = vmatpush1.msra.mxu0 0.0
    %1838 = vmatprep.subr.mxu0 0.0
    %1839 = vmatpush1.msra.mxu0 0.0
    %1840 = vmatprep.subr.mxu0 0.0
    %1841 = vmatpush1.msra.mxu0 0.0
    %1842 = vmatprep.subr.mxu0 0.0
    %1843 = vmatpush1.msra.mxu0 0.0
    %1844 = vmatprep.subr.mxu0 0.0
    %1845 = vmatpush1.msra.mxu0 0.0
    %1846 = vmatprep.mubr.f32.mxu0 0.0
    %1847 = vmatmul.mubr.f32.gmra.mrb[0].mxu0 %v1777
    %v1848 = vpop.f32.mrb[0].mxu0
    %v1849 = vadd.f32 %v1774, %v1848
    %v1850 = vpop.f32.mrb[0].mxu0
    %1851 = vmatprep.mubr.f32.mxu0 0.0
    %1852 = vmatmul.mubr.f32.gmra.mrb[0].mxu0 %v1780
    %v1853 = vpop.f32.mrb[0].mxu0
    %v1854 = vadd.f32 %v1774, %v1853
    %v1855 = vpop.f32.mrb[0].mxu0
    %1856 = vdwg.mxu0
    %v1857 = vmax.f32 %v1849, 0.0
    %v1858 = vmax.f32 %v1854, 0.0
    %v1859 = vld [vmem:[%s11] sm:$0xff]
    %v1860 = vld [vmem:[%s11 + $0x8] sm:$0xff]
    %v1861 = vld [vmem:[%s11 + $0x10] sm:$0xff]
    %v1862 = vld [vmem:[%s11 + $0x18] sm:$0xff]
    %v1863 = vld [vmem:[%s11 + $0x20] sm:$0xff]
    %v1864 = vld [vmem:[%s11 + $0x28] sm:$0xff]
    %v1865 = vld [vmem:[%s11 + $0x30] sm:$0xff]
    %v1866 = vld [vmem:[%s11 + $0x38] sm:$0xff]
    %v1867 = vld [vmem:[%s11 + $0x40] sm:$0xff]
    %v1868 = vld [vmem:[%s11 + $0x48] sm:$0xff]
    %v1869 = vld [vmem:[%s11 + $0x50] sm:$0xff]
    %v1870 = vld [vmem:[%s11 + $0x58] sm:$0xff]
    %v1871 = vld [vmem:[%s11 + $0x60] sm:$0xff]
    %v1872 = vld [vmem:[%s11 + $0x68] sm:$0xff]
    %v1873 = vld [vmem:[%s11 + $0x70] sm:$0xff]
    %v1874 = vld [vmem:[%s11 + $0x78] sm:$0xff]
    %v1875 = vld [vmem:[%s12] sm:$0x1]
    %v1877 = vlaneseq
    %v1878 = vshrl.u32 %v1877, 7
    %v1879 = vsub.s32 0, %v1878
    %v1880 = vrot.slane %v1875, %v1879
    %1882 = vmatprep.subr.mxu0 0.0
    %1883 = vmatpush1.msra.mxu0 %v1859
    %1884 = vmatprep.subr.mxu0 0.0
    %1885 = vmatpush1.msra.mxu0 %v1860
    %1886 = vmatprep.subr.mxu0 0.0
    %1887 = vmatpush1.msra.mxu0 %v1861
    %1888 = vmatprep.subr.mxu0 0.0
    %1889 = vmatpush1.msra.mxu0 %v1862
    %1890 = vmatprep.subr.mxu0 0.0
    %1891 = vmatpush1.msra.mxu0 %v1863
    %1892 = vmatprep.subr.mxu0 0.0
    %1893 = vmatpush1.msra.mxu0 %v1864
    %1894 = vmatprep.subr.mxu0 0.0
    %1895 = vmatpush1.msra.mxu0 %v1865
    %1896 = vmatprep.subr.mxu0 0.0
    %1897 = vmatpush1.msra.mxu0 %v1866
    %1898 = vmatprep.subr.mxu0 0.0
    %1899 = vmatpush1.msra.mxu0 %v1867
    %1900 = vmatprep.subr.mxu0 0.0
    %1901 = vmatpush1.msra.mxu0 %v1868
    %1902 = vmatprep.subr.mxu0 0.0
    %1903 = vmatpush1.msra.mxu0 %v1869
    %1904 = vmatprep.subr.mxu0 0.0
    %1905 = vmatpush1.msra.mxu0 %v1870
    %1906 = vmatprep.subr.mxu0 0.0
    %1907 = vmatpush1.msra.mxu0 %v1871
    %1908 = vmatprep.subr.mxu0 0.0
    %1909 = vmatpush1.msra.mxu0 %v1872
    %1910 = vmatprep.subr.mxu0 0.0
    %1911 = vmatpush1.msra.mxu0 %v1873
    %1912 = vmatprep.subr.mxu0 0.0
    %1913 = vmatpush1.msra.mxu0 %v1874
    %1914 = vmatprep.subr.mxu0 0.0
    %1915 = vmatpush1.msra.mxu0 0.0
    %1916 = vmatprep.subr.mxu0 0.0
    %1917 = vmatpush1.msra.mxu0 0.0
    %1918 = vmatprep.subr.mxu0 0.0
    %1919 = vmatpush1.msra.mxu0 0.0
    %1920 = vmatprep.subr.mxu0 0.0
    %1921 = vmatpush1.msra.mxu0 0.0
    %1922 = vmatprep.subr.mxu0 0.0
    %1923 = vmatpush1.msra.mxu0 0.0
    %1924 = vmatprep.subr.mxu0 0.0
    %1925 = vmatpush1.msra.mxu0 0.0
    %1926 = vmatprep.subr.mxu0 0.0
    %1927 = vmatpush1.msra.mxu0 0.0
    %1928 = vmatprep.subr.mxu0 0.0
    %1929 = vmatpush1.msra.mxu0 0.0
    %1930 = vmatprep.subr.mxu0 0.0
    %1931 = vmatpush1.msra.mxu0 0.0
    %1932 = vmatprep.subr.mxu0 0.0
    %1933 = vmatpush1.msra.mxu0 0.0
    %1934 = vmatprep.subr.mxu0 0.0
    %1935 = vmatpush1.msra.mxu0 0.0
    %1936 = vmatprep.subr.mxu0 0.0
    %1937 = vmatpush1.msra.mxu0 0.0
    %1938 = vmatprep.subr.mxu0 0.0
    %1939 = vmatpush1.msra.mxu0 0.0
    %1940 = vmatprep.subr.mxu0 0.0
    %1941 = vmatpush1.msra.mxu0 0.0
    %1942 = vmatprep.subr.mxu0 0.0
    %1943 = vmatpush1.msra.mxu0 0.0
    %1944 = vmatprep.subr.mxu0 0.0
    %1945 = vmatpush1.msra.mxu0 0.0
    %1946 = vmatprep.mubr.f32.mxu0 0.0
    %1947 = vmatmul.mubr.f32.gmra.mrb[0].mxu0 %v1857
    %v1948 = vpop.f32.mrb[0].mxu0
    %v1949 = vadd.f32 %v1880, %v1948
    %v1950 = vpop.f32.mrb[0].mxu0
    %1951 = vmatprep.mubr.f32.mxu0 0.0
    %1952 = vmatmul.mubr.f32.gmra.mrb[0].mxu0 %v1858
    %v1953 = vpop.f32.mrb[0].mxu0
    %v1954 = vadd.f32 %v1880, %v1953
    %v1955 = vpop.f32.mrb[0].mxu0
    %1956 = vdwg.mxu0
    %v1957 = vadd.f32 %v1949, %v1763
    %v1958 = vadd.f32 %v1954, %v1764
    %v1959 = vld [vmem:[%s13] sm:$0x1]
    %v1960 = vld [vmem:[%s14] sm:$0x1]
    %v1961 = vsel %vm177, %v1957, 0.0
    %1962 = vadd.xlane.f32.xlu0 %v1961
    %v1963 = vpop.xlane.xlu0 %1962
    %v1964 = vsel %vm177, %v1958, 0.0
    %1965 = vadd.xlane.f32.xlu0 %v1964
    %v1966 = vpop.xlane.xlu0 %1965
    %v1967 = vmul.f32 %v1963, %v1728
    %v1968 = vmul.f32 %v1966, %v1728
    %v1969 = vsub.f32 %v1957, %v1967
    %v1970 = vsub.f32 %v1958, %v1968
    %v1971 = vmul.f32 %v1969, %v1969
    %v1972 = vmul.f32 %v1970, %v1970
    %v1973 = vsel %vm177, %v1971, 0.0
    %1974 = vadd.xlane.f32.xlu0 %v1973
    %v1975 = vpop.xlane.xlu0 %1974
    %v1976 = vsel %vm177, %v1972, 0.0
    %1977 = vadd.xlane.f32.xlu0 %v1976
    %v1978 = vpop.xlane.xlu0 %1977
    %v1979 = vmul.f32 %v1975, %v1728
    %v1980 = vmul.f32 %v1978, %v1728
    %v1981 = vadd.f32 %v1979, 1e-05
    %v1982 = vadd.f32 %v1980, 1e-05
    %v1983 = vrsqrt.pop %v1981
    %v1984 = vrsqrt.pop %v1982
    %v1985 = vmul.f32 %v1969, %v1983
    %v1986 = vmul.f32 %v1970, %v1984
    %v1988 = vlaneseq
    %v1989 = vshrl.u32 %v1988, 7
    %v1990 = vsub.s32 0, %v1989
    %v1991 = vrot.slane %v1959, %v1990
    %v1993 = vmul.f32 %v1985, %v1991
    %v1994 = vmul.f32 %v1986, %v1991
    %v1996 = vlaneseq
    %v1997 = vshrl.u32 %v1996, 7
    %v1998 = vsub.s32 0, %v1997
    %v1999 = vrot.slane %v1960, %v1998
    %v2001 = vadd.f32 %v1993, %v1999
    %v2002 = vadd.f32 %v1994, %v1999
    %v2004 = vrot.slane %v2002, 7
    %vm2006 = vcmask 1040384
    %v2007 = vsel %vm2006, %v2001, %v2004
    %v2009 = vrot.slane %v2001, 1
    %v2011 = vsel %vm2006, %v2009, %v2002
    %v2012 = vrot.slane %v2001, 2
    %v2014 = vrot.slane %v2002, 1
    %v2016 = vsel %vm2006, %v2012, %v2014
    %v2017 = vrot.slane %v2001, 3
    %v2019 = vrot.slane %v2002, 2
    %v2021 = vsel %vm2006, %v2017, %v2019
    %v2022 = vrot.slane %v2001, 4
    %v2024 = vrot.slane %v2002, 3
    %v2026 = vsel %vm2006, %v2022, %v2024
    %v2027 = vrot.slane %v2001, 5
    %v2029 = vrot.slane %v2002, 4
    %v2031 = vsel %vm2006, %v2027, %v2029
    %v2032 = vrot.slane %v2001, 6
    %v2034 = vrot.slane %v2002, 5
    %v2036 = vsel %vm2006, %v2032, %v2034
    %v2037 = vrot.slane %v2001, 7
    %v2039 = vrot.slane %v2002, 6
    %v2041 = vsel %vm2006, %v2037, %v2039
    %2043 = vrot.lane.b32.xlu0 %v2011, 32
    %v2044 = vpop.permute.xlu0 %2043
    %2047 = vrot.lane.b32.xlu0 %v2016, 64
    %v2048 = vpop.permute.xlu0 %2047
    %2051 = vrot.lane.b32.xlu0 %v2021, 96
    %v2052 = vpop.permute.xlu0 %2051
    %2055 = vrot.lane.b32.xlu0 %v2031, 32
    %v2056 = vpop.permute.xlu0 %2055
    %2059 = vrot.lane.b32.xlu0 %v2036, 64
    %v2060 = vpop.permute.xlu0 %2059
    %2063 = vrot.lane.b32.xlu0 %v2041, 96
    %v2064 = vpop.permute.xlu0 %2063
    %v2066 = vsel %vm177, %v2007, %v2044
    %v2067 = vsel %vm88, %v2066, %v2048
    %vm2068 = vcmask 785408
    %v2069 = vsel %vm2068, %v2067, %v2052
    %v2070 = vsel %vm177, %v2026, %v2056
    %v2071 = vsel %vm88, %v2070, %v2060
    %v2072 = vsel %vm2068, %v2071, %v2064
    %v2073 = vld [vmem:[%s15] sm:$0xff]
    %v2074 = vld [vmem:[%s15 + $0x8] sm:$0xff]
    %v2075 = vld [vmem:[%s15 + $0x10] sm:$0xff]
    %v2076 = vld [vmem:[%s15 + $0x18] sm:$0xff]
    %v2077 = vld [vmem:[%s15 + $0x20] sm:$0xff]
    %v2078 = vld [vmem:[%s15 + $0x28] sm:$0xff]
    %v2079 = vld [vmem:[%s15 + $0x30] sm:$0xff]
    %v2080 = vld [vmem:[%s15 + $0x38] sm:$0xff]
    %v2081 = vld [vmem:[%s15 + $0x40] sm:$0xff]
    %v2082 = vld [vmem:[%s15 + $0x48] sm:$0xff]
    %v2083 = vld [vmem:[%s15 + $0x50] sm:$0xff]
    %v2084 = vld [vmem:[%s15 + $0x58] sm:$0xff]
    %v2085 = vld [vmem:[%s15 + $0x60] sm:$0xff]
    %v2086 = vld [vmem:[%s15 + $0x68] sm:$0xff]
    %v2087 = vld [vmem:[%s15 + $0x70] sm:$0xff]
    %v2088 = vld [vmem:[%s15 + $0x78] sm:$0xff]
    %v2089 = vld [vmem:[%s15 + $0x80] sm:$0xff]
    %v2090 = vld [vmem:[%s15 + $0x88] sm:$0xff]
    %v2091 = vld [vmem:[%s15 + $0x90] sm:$0xff]
    %v2092 = vld [vmem:[%s15 + $0x98] sm:$0xff]
    %v2093 = vld [vmem:[%s15 + $0xa0] sm:$0xff]
    %v2094 = vld [vmem:[%s15 + $0xa8] sm:$0xff]
    %v2095 = vld [vmem:[%s15 + $0xb0] sm:$0xff]
    %v2096 = vld [vmem:[%s15 + $0xb8] sm:$0xff]
    %v2097 = vld [vmem:[%s15 + $0xc0] sm:$0xff]
    %v2098 = vld [vmem:[%s15 + $0xc8] sm:$0xff]
    %v2099 = vld [vmem:[%s15 + $0xd0] sm:$0xff]
    %v2100 = vld [vmem:[%s15 + $0xd8] sm:$0xff]
    %v2101 = vld [vmem:[%s15 + $0xe0] sm:$0xff]
    %v2102 = vld [vmem:[%s15 + $0xe8] sm:$0xff]
    %v2103 = vld [vmem:[%s15 + $0xf0] sm:$0xff]
    %v2104 = vld [vmem:[%s15 + $0xf8] sm:$0xff]
    %v2105 = vld [vmem:[%s16] sm:$0x1]
    %v2107 = vlaneseq
    %v2108 = vshrl.u32 %v2107, 7
    %v2109 = vsub.s32 0, %v2108
    %v2110 = vrot.slane %v2105, %v2109
    %2112 = vmatprep.subr.mxu0 0.0
    %2113 = vmatpush1.msra.mxu0 %v2073
    %2114 = vmatprep.subr.mxu0 0.0
    %2115 = vmatpush1.msra.mxu0 %v2074
    %2116 = vmatprep.subr.mxu0 0.0
    %2117 = vmatpush1.msra.mxu0 %v2075
    %2118 = vmatprep.subr.mxu0 0.0
    %2119 = vmatpush1.msra.mxu0 %v2076
    %2120 = vmatprep.subr.mxu0 0.0
    %2121 = vmatpush1.msra.mxu0 %v2077
    %2122 = vmatprep.subr.mxu0 0.0
    %2123 = vmatpush1.msra.mxu0 %v2078
    %2124 = vmatprep.subr.mxu0 0.0
    %2125 = vmatpush1.msra.mxu0 %v2079
    %2126 = vmatprep.subr.mxu0 0.0
    %2127 = vmatpush1.msra.mxu0 %v2080
    %2128 = vmatprep.subr.mxu0 0.0
    %2129 = vmatpush1.msra.mxu0 %v2081
    %2130 = vmatprep.subr.mxu0 0.0
    %2131 = vmatpush1.msra.mxu0 %v2082
    %2132 = vmatprep.subr.mxu0 0.0
    %2133 = vmatpush1.msra.mxu0 %v2083
    %2134 = vmatprep.subr.mxu0 0.0
    %2135 = vmatpush1.msra.mxu0 %v2084
    %2136 = vmatprep.subr.mxu0 0.0
    %2137 = vmatpush1.msra.mxu0 %v2085
    %2138 = vmatprep.subr.mxu0 0.0
    %2139 = vmatpush1.msra.mxu0 %v2086
    %2140 = vmatprep.subr.mxu0 0.0
    %2141 = vmatpush1.msra.mxu0 %v2087
    %2142 = vmatprep.subr.mxu0 0.0
    %2143 = vmatpush1.msra.mxu0 %v2088
    %2144 = vmatprep.subr.mxu0 0.0
    %2145 = vmatpush1.msra.mxu0 %v2089
    %2146 = vmatprep.subr.mxu0 0.0
    %2147 = vmatpush1.msra.mxu0 %v2090
    %2148 = vmatprep.subr.mxu0 0.0
    %2149 = vmatpush1.msra.mxu0 %v2091
    %2150 = vmatprep.subr.mxu0 0.0
    %2151 = vmatpush1.msra.mxu0 %v2092
    %2152 = vmatprep.subr.mxu0 0.0
    %2153 = vmatpush1.msra.mxu0 %v2093
    %2154 = vmatprep.subr.mxu0 0.0
    %2155 = vmatpush1.msra.mxu0 %v2094
    %2156 = vmatprep.subr.mxu0 0.0
    %2157 = vmatpush1.msra.mxu0 %v2095
    %2158 = vmatprep.subr.mxu0 0.0
    %2159 = vmatpush1.msra.mxu0 %v2096
    %2160 = vmatprep.subr.mxu0 0.0
    %2161 = vmatpush1.msra.mxu0 %v2097
    %2162 = vmatprep.subr.mxu0 0.0
    %2163 = vmatpush1.msra.mxu0 %v2098
    %2164 = vmatprep.subr.mxu0 0.0
    %2165 = vmatpush1.msra.mxu0 %v2099
    %2166 = vmatprep.subr.mxu0 0.0
    %2167 = vmatpush1.msra.mxu0 %v2100
    %2168 = vmatprep.subr.mxu0 0.0
    %2169 = vmatpush1.msra.mxu0 %v2101
    %2170 = vmatprep.subr.mxu0 0.0
    %2171 = vmatpush1.msra.mxu0 %v2102
    %2172 = vmatprep.subr.mxu0 0.0
    %2173 = vmatpush1.msra.mxu0 %v2103
    %2174 = vmatprep.subr.mxu0 0.0
    %2175 = vmatpush1.msra.mxu0 %v2104
    %2176 = vmatprep.mubr.f32.mxu0 %v2072
    %2177 = vmatmul.mubr.f32.gmra.mrb[0].mxu0 %v2069
    %v2178 = vpop.f32.mrb[0].mxu0
    %v2179 = vadd.f32 %v2110, %v2178
    %v2180 = vpop.f32.mrb[0].mxu0
    %2181 = vdwg.mxu0
    %vm2182 = vcmask 123904
    %v2183 = vsel %vm2182, %v2179, 0.0
    %v2184 = vrot.slane %v2183, 4
    %v2185 = vadd.f32 %v2183, %v2184
    %v2186 = vrot.slane %v2185, 2
    %v2187 = vadd.f32 %v2185, %v2186
    %v2188 = vrot.slane %v2187, 1
    %v2189 = vadd.f32 %v2187, %v2188
    %v2190 = vrcp.pop 2.0
    %v2191 = vmul.f32 %v2189, %v2190
    %v2192 = vsub.f32 %v2179, %v2191
    %v2193 = vmul.f32 %v2192, %v2192
    %v2194 = vsel %vm2182, %v2193, 0.0
    %v2195 = vrot.slane %v2194, 4
    %v2196 = vadd.f32 %v2194, %v2195
    %v2197 = vrot.slane %v2196, 2
    %v2198 = vadd.f32 %v2196, %v2197
    %v2199 = vrot.slane %v2198, 1
    %v2200 = vadd.f32 %v2198, %v2199
    %v2201 = vmul.f32 %v2200, %v2190
    %v2202 = vadd.f32 %v2201, 1e-05
    %v2203 = vrsqrt.pop %v2202
    %v2204 = vmul.f32 %v2192, %v2203
    %v2205 = vld [vmem:[%s17] sm:$0x1]
    %v2207 = vlaneseq
    %v2208 = vshrl.u32 %v2207, 7
    %v2209 = vsub.s32 0, %v2208
    %v2210 = vrot.slane %v2205, %v2209
    %v2212 = vmul.f32 %v2204, %v2210
    %v2213 = vld [vmem:[%s18] sm:$0x1]
    %v2215 = vlaneseq
    %v2216 = vshrl.u32 %v2215, 7
    %v2217 = vsub.s32 0, %v2216
    %v2218 = vrot.slane %v2213, %v2217
    %v2220 = vadd.f32 %v2212, %v2218
    %2221 = vst.msk [vmem:[#allocation2] sm:$0x3] %vm2182, %v2220
    // Predicated region
    $region78: #{transformer_forward.1} parent=1 // pred_check
      _
    $region79: #{transformer_forward.1} parent=1 // pred_check_branch
      %2223 = sbr.rel (0) target = $region81
    $region80: #{transformer_forward.1} parent=1 // pred_region
      %s2225 = ssub.s32 32, 32
      %2226 = vsyncadd [#allocation3], %s2225
      %s2228 = sshll.u32 [#allocation2], 4
      %s2229 = int_to_ptr.vmem [resolvable:$true] %s2228
      %2231 = dma.vmem_to_hbm [thread:$0]  %s2229, 32, %s19, [#allocation3]
    $region81: #{transformer_forward.1} parent=1 // pred_fallthru
      _
    // Predicated region
    $region82: #{transformer_forward.1} parent=1 // pred_check
      _
    $region83: #{transformer_forward.1} parent=1 // pred_check_branch
      %2233 = sbr.rel (0) target = $region85
    $region84: #{transformer_forward.1} parent=1 // pred_region
      %2234 = dma.done [#allocation3], 32
    $region85: #{transformer_forward.1} parent=1 // pred_fallthru
      _
    %2235 = vsyncpa [#allocation3], 1

</llo_original>
